<compile_context>
chip_gen: v7x
topology: tpu7x:2x2x1
jax: 0.10.0
libtpu: 0.0.40
codegen_flags: <defaults>
</compile_context>

<pallas_src>
from functools import partial

import jax
import jax.numpy as jnp
from jax.experimental import pallas as pl
from jax.experimental.pallas import tpu as pltpu

LN_EPS = 1e-5  # PyTorch nn.LayerNorm default


# ----------------------------------------------------------------------------
# Packed-buffer layouts (shared between pack_params and the kernel).
# ----------------------------------------------------------------------------
def _align(v, a):
    return ((v + a - 1) // a) * a


def _wbuf_layout(n_in, seq, d_model, dim_ff, o_pad):
    """Row offsets of every weight inside the single stacked bf16 buffer."""
    lay = {}
    off = 0
    for name, rows in (("tmat", n_in),            # (N, S*N)   lane-tile matrix
                       ("wue",  seq * n_in),      # (S*N, D)   unfold ⊗ embedding
                       ("wq", d_model), ("wk", d_model),
                       ("wv", d_model), ("wo", d_model),
                       ("w1", d_model), ("w2", dim_ff),
                       ("wfc", d_model)):         # (D, o_pad) classifier head
        lay[name] = off
        off += _align(rows, 16)                   # bf16 sublane tile = 16
    lay["rows"] = off
    lay["lanes"] = max(seq * n_in, d_model, dim_ff, o_pad, 128)
    return lay


def _vecs_layout(n_in, seq, d_model, dim_ff, nhead, o_pad, batch_tile):
    """Row offsets inside the single stacked f32 vector/mask buffer."""
    lay = {}
    off = 0
    lay["pos"] = off                               # (batch_tile*S, D) cls/pos/emb-bias
    off += batch_tile * seq
    for name in ("ln0_g", "ln0_b", "bq", "bk", "bv", "bo",
                 "ln1_g", "ln1_b", "b1", "b2", "ln2_g", "ln2_b", "bf"):
        lay[name] = off
        off += 1
    off = _align(off, 8)
    lay["qm"] = off; off += nhead                  # per-head lane mask * 1/sqrt(hd)
    lay["vm"] = off; off += nhead                  # per-head lane mask
    off = _align(off, 8)
    lay["selm"] = off; off += batch_tile * seq     # (batch_tile*S, S*N) window-select
    lay["rows"] = off
    lay["lanes"] = max(seq * n_in, dim_ff, d_model, o_pad, 128)
    return lay


# ----------------------------------------------------------------------------
# Kernel
# ----------------------------------------------------------------------------
def transformer_cls_kernel(x_ref,      # (Bt, 1, N)          f32  raw input
                           wbuf_ref,   # (wbuf_rows, lanes)  bf16 all matmul weights
                           vecs_ref,   # (vecs_rows, lanes)  f32  tables / biases / masks
                           out_ref,    # (Bt, 1, o_pad)      f32  padded logits
                           *, n_in, seq, d_model, nhead, dim_ff, o_pad, batch_tile):
    f32, bf16 = jnp.float32, jnp.bfloat16
    N, S, D, H, F = n_in, seq, d_model, nhead, dim_ff
    wb = _wbuf_layout(N, S, D, F, o_pad)
    vl = _vecs_layout(N, S, D, F, H, o_pad, batch_tile)

    Bt = x_ref.shape[0]
    R = Bt * S

    def vrow(off, width):
        return vecs_ref[off:off + 1, 0:width]                    # (1, width)

    def layer_norm(v, g_off):                                     # gamma at g_off, beta next row
        g = vrow(g_off, D)
        b = vrow(g_off + 1, D)
        mu = jnp.mean(v, axis=-1, keepdims=True)
        var = jnp.mean(jnp.square(v - mu), axis=-1, keepdims=True)
        return (v - mu) * jax.lax.rsqrt(var + LN_EPS) * g + b

    # ---- embedding: unfold ⊗ Linear folded into matmuls (no slices / concat) ----
    x2d = x_ref[...].reshape(Bt, N)                                        # (Bt, N)
    xrep = jnp.broadcast_to(x2d[:, None, :], (Bt, S, N)).reshape(R, N)     # row (b,s) = x[b]
    tmat = wbuf_ref[wb["tmat"]:wb["tmat"] + N, 0:S * N]                    # (N, S*N)
    w_ue = wbuf_ref[wb["wue"]:wb["wue"] + S * N, 0:D]                      # (S*N, D)
    selm = vecs_ref[vl["selm"]:vl["selm"] + R, 0:S * N]                    # (R, S*N) 0/1

    xtiled = jnp.dot(xrep.astype(bf16), tmat, preferred_element_type=f32)  # x placed S times
    xsel = (xtiled * selm).astype(bf16)                                    # keep window s(r)
    x2 = jnp.dot(xsel, w_ue, preferred_element_type=f32)                   # (R, D) = unfold@emb_w
    x2 = x2 + vecs_ref[vl["pos"]:vl["pos"] + R, 0:D]                       # cls + pos + emb bias
    x2 = layer_norm(x2, vl["ln0_g"])                                       # pre-encoder LN

    # ---- encoder layer (post-norm, relu, eval dropout).  num_layers == 1 and the
    #      readout is x[0], so only CLS rows are needed after the attention mix. --
    x_cls = x2.reshape(Bt, S, D)[:, 0, :]                                  # (Bt, D)

    wq = wbuf_ref[wb["wq"]:wb["wq"] + D, 0:D]
    wk = wbuf_ref[wb["wk"]:wb["wk"] + D, 0:D]
    wv = wbuf_ref[wb["wv"]:wb["wv"] + D, 0:D]
    wo = wbuf_ref[wb["wo"]:wb["wo"] + D, 0:D]

    xb = x2.astype(bf16)
    k = jnp.dot(xb, wk, preferred_element_type=f32) + vrow(vl["bk"], D)    # (R, D)
    v = jnp.dot(xb, wv, preferred_element_type=f32) + vrow(vl["bv"], D)    # (R, D)
    q = jnp.dot(x_cls.astype(bf16), wq, preferred_element_type=f32) + vrow(vl["bq"], D)

    qm = vecs_ref[vl["qm"]:vl["qm"] + H, 0:D]                              # (H, D), scaled
    vm = vecs_ref[vl["vm"]:vl["vm"] + H, 0:D]                              # (H, D)
    qe = q[:, None, :] * qm[None, :, :]                                    # (Bt, H, D)
    k3 = k.reshape(Bt, S, D)
    v3 = v.reshape(Bt, S, D)

    scores = jnp.einsum('bhd,bsd->bhs', qe.astype(bf16), k3.astype(bf16),
                        preferred_element_type=f32)                        # (Bt, H, S)
    scores = scores - jnp.max(scores, axis=-1, keepdims=True)
    p = jnp.exp(scores)
    p = p * pl.reciprocal(jnp.sum(p, axis=-1, keepdims=True), approx=True)
    ctx = jnp.einsum('bhs,bsd->bhd', p.astype(bf16), v3.astype(bf16),
                     preferred_element_type=f32)                           # (Bt, H, D)
    # Non-head lanes of each head's context are zeroed, so the head-axis sum
    # reconstructs the concatenated multi-head output without any transpose.
    attn = jnp.sum(ctx * vm[None, :, :], axis=1)                           # (Bt, D)
    attn = jnp.dot(attn.astype(bf16), wo, preferred_element_type=f32) + vrow(vl["bo"], D)

    y = layer_norm(x_cls + attn, vl["ln1_g"])                              # norm1

    w1 = wbuf_ref[wb["w1"]:wb["w1"] + D, 0:F]
    w2 = wbuf_ref[wb["w2"]:wb["w2"] + F, 0:D]
    h1 = jnp.maximum(jnp.dot(y.astype(bf16), w1, preferred_element_type=f32)
                     + vrow(vl["b1"], F), 0.0)                             # (Bt, F)
    h2 = jnp.dot(h1.astype(bf16), w2, preferred_element_type=f32) + vrow(vl["b2"], D)
    z = layer_norm(y + h2, vl["ln2_g"])                                    # norm2

    # ---- classifier head (lane-padded to o_pad for an unmasked store) -----------
    wfc = wbuf_ref[wb["wfc"]:wb["wfc"] + D, 0:o_pad]
    logits = jnp.dot(z.astype(bf16), wfc, preferred_element_type=f32) + vrow(vl["bf"], o_pad)
    out_ref[...] = logits.reshape(Bt, 1, o_pad)


# ----------------------------------------------------------------------------
# Parameters
# ----------------------------------------------------------------------------
def make_params(key, window_size, seq_plus_one, d_model, dim_ff, output_size):
    """Raw parameters. NOTE: linear weights are stored (in, out); a real PyTorch
    checkpoint (which stores (out, in)) must be transposed when importing."""
    ks = jax.random.split(key, 8)
    f32 = jnp.float32
    sc = 0.02
    return {
        "emb_w": jax.random.normal(ks[0], (window_size, d_model), f32) * sc,
        "emb_b": jnp.zeros((1, d_model), f32),
        "cls":   jax.random.normal(ks[1], (1, d_model), f32),
        "pos":   jax.random.normal(ks[2], (seq_plus_one, d_model), f32),
        "ln0_g": jnp.ones((1, d_model), f32),
        "ln0_b": jnp.zeros((1, d_model), f32),
        "wqkv":  jax.random.normal(ks[3], (d_model, 3 * d_model), f32) * sc,
        "bqkv":  jnp.zeros((1, 3 * d_model), f32),
        "wo":    jax.random.normal(ks[4], (d_model, d_model), f32) * sc,
        "bo":    jnp.zeros((1, d_model), f32),
        "ln1_g": jnp.ones((1, d_model), f32),
        "ln1_b": jnp.zeros((1, d_model), f32),
        "w1":    jax.random.normal(ks[5], (d_model, dim_ff), f32) * sc,
        "b1":    jnp.zeros((1, dim_ff), f32),
        "w2":    jax.random.normal(ks[6], (dim_ff, d_model), f32) * sc,
        "b2":    jnp.zeros((1, d_model), f32),
        "ln2_g": jnp.ones((1, d_model), f32),
        "ln2_b": jnp.zeros((1, d_model), f32),
        "wf":    jax.random.normal(ks[7], (d_model, output_size), f32) * sc,
        "bf":    jnp.zeros((1, output_size), f32),
    }


def pack_params(raw, *, nhead, input_size, batch_tile, o_pad=128):
    """One-time weight preprocessing: fold unfold/cls/pos/emb-bias, build head
    lane masks and the window-select mask, coalesce everything into two buffers."""
    f32, bf16 = jnp.float32, jnp.bfloat16
    W, D = raw["emb_w"].shape
    S = raw["pos"].shape[0]
    L = S - 1
    N = input_size
    assert N - W + 1 == L, "input_size / window_size / pos-embedding length mismatch"
    F = raw["w1"].shape[1]
    O = raw["wf"].shape[1]
    H = nhead
    hd = D // H
    assert hd * H == D

    wb = _wbuf_layout(N, S, D, F, o_pad)
    vl = _vecs_layout(N, S, D, F, H, o_pad, batch_tile)

    # unfold ⊗ embedding:  wue3[n, s, d] = emb_w[n-(s-1), d]  (s=0 = CLS slot = 0)
    wue3 = jnp.zeros((N, S, D), f32)
    for i in range(L):                             # window i -> sequence slot s = i+1
        wue3 = wue3.at[i:i + W, i + 1, :].set(raw["emb_w"])
    w_ue = jnp.transpose(wue3, (1, 0, 2)).reshape(S * N, D)      # rows ordered (s, n)
    tmat = jnp.tile(jnp.eye(N, dtype=f32), (1, S))               # (N, S*N)

    wq = raw["wqkv"][:, 0:D]; wk = raw["wqkv"][:, D:2 * D]; wv = raw["wqkv"][:, 2 * D:3 * D]
    bq = raw["bqkv"][:, 0:D]; bk = raw["bqkv"][:, D:2 * D]; bv = raw["bqkv"][:, 2 * D:3 * D]

    wf_pad = jnp.zeros((D, o_pad), f32).at[:, :O].set(raw["wf"])
    bf_pad = jnp.zeros((1, o_pad), f32).at[:, :O].set(raw["bf"])

    # ---- stacked bf16 weight buffer (one DMA) --------------------------------
    wbuf = jnp.zeros((wb["rows"], wb["lanes"]), f32)
    for name, arr in (("tmat", tmat), ("wue", w_ue), ("wq", wq), ("wk", wk),
                      ("wv", wv), ("wo", raw["wo"]), ("w1", raw["w1"]),
                      ("w2", raw["w2"]), ("wfc", wf_pad)):
        r, c = arr.shape
        wbuf = wbuf.at[wb[name]:wb[name] + r, 0:c].set(arr)
    wbuf = wbuf.astype(bf16)

    # ---- stacked f32 vector / table buffer (one DMA) --------------------------
    vecs = jnp.zeros((vl["rows"], vl["lanes"]), f32)
    pos_add = jnp.concatenate([raw["pos"][0:1] + raw["cls"],
                               raw["pos"][1:] + raw["emb_b"]], axis=0)      # (S, D)
    vecs = vecs.at[vl["pos"]:vl["pos"] + batch_tile * S, 0:D].set(
        jnp.tile(pos_add, (batch_tile, 1)))
    for name, arr in (("ln0_g", raw["ln0_g"]), ("ln0_b", raw["ln0_b"]),
                      ("bq", bq), ("bk", bk), ("bv", bv), ("bo", raw["bo"]),
                      ("ln1_g", raw["ln1_g"]), ("ln1_b", raw["ln1_b"]),
                      ("b1", raw["b1"]), ("b2", raw["b2"]),
                      ("ln2_g", raw["ln2_g"]), ("ln2_b", raw["ln2_b"]),
                      ("bf", bf_pad)):
        vecs = vecs.at[vl[name]:vl[name] + 1, 0:arr.shape[1]].set(arr)
    head_of_lane = jnp.arange(D) // hd
    hmask = (head_of_lane[None, :] == jnp.arange(H)[:, None]).astype(f32)   # (H, D)
    vecs = vecs.at[vl["qm"]:vl["qm"] + H, 0:D].set(hmask * (1.0 / (hd ** 0.5)))
    vecs = vecs.at[vl["vm"]:vl["vm"] + H, 0:D].set(hmask)
    sel = jnp.repeat(jnp.eye(S, dtype=f32), N, axis=1)                      # (S, S*N)
    vecs = vecs.at[vl["selm"]:vl["selm"] + batch_tile * S, 0:S * N].set(
        jnp.tile(sel, (batch_tile, 1)))

    dims = dict(n_in=N, seq=S, d_model=D, nhead=H, dim_ff=F,
                out=O, o_pad=o_pad, batch_tile=batch_tile)
    return {"wbuf": wbuf, "vecs": vecs, "dims": dims}


# ----------------------------------------------------------------------------
# Wrapper
# ----------------------------------------------------------------------------
def _use_batch_grid(batch):
    """Split the batch over TensorCores only on v7x-class chips (2 TC / chip);
    on v5e / v6e a grid would just add per-step overhead at this size."""
    if batch < 2 or batch % 2 != 0:
        return False
    try:
        dev = jax.devices()[0]
        if dev.platform != "tpu":
            return False
        kind = dev.device_kind.lower()
    except Exception:
        return False
    return ("v7" in kind) or ("7x" in kind)


def transformer_classifier_forward(x, packed):
    """x: (B, N) raw input. Returns (B, output_size) logits."""
    dims = packed["dims"]
    N, S, D, H, F = dims["n_in"], dims["seq"], dims["d_model"], dims["nhead"], dims["dim_ff"]
    o_pad, O, pos_tile = dims["o_pad"], dims["out"], dims["batch_tile"]
    B = x.shape[0]
    assert x.shape[1] == N

    kern = partial(transformer_cls_kernel, n_in=N, seq=S, d_model=D, nhead=H,
                   dim_ff=F, o_pad=o_pad, batch_tile=pos_tile)
    x3 = x.reshape(B, 1, N).astype(jnp.float32)
    out_shape = jax.ShapeDtypeStruct((B, 1, o_pad), jnp.float32)

    if _use_batch_grid(B):
        bt = B // 2
        assert bt <= pos_tile
        wshape, vshape = packed["wbuf"].shape, packed["vecs"].shape
        out = pl.pallas_call(
            kern,
            out_shape=out_shape,
            grid=(2,),
            in_specs=[pl.BlockSpec((bt, 1, N), lambda i: (i, 0, 0)),
                      pl.BlockSpec(wshape, lambda i: (0, 0)),
                      pl.BlockSpec(vshape, lambda i: (0, 0))],
            out_specs=pl.BlockSpec((bt, 1, o_pad), lambda i: (i, 0, 0)),
            compiler_params=pltpu.CompilerParams(
                dimension_semantics=("parallel",)),
        )(x3, packed["wbuf"], packed["vecs"])
    else:
        assert B <= pos_tile
        vmem = pl.BlockSpec(memory_space=pltpu.MemorySpace.VMEM)
        out = pl.pallas_call(
            kern,
            out_shape=out_shape,
            in_specs=[vmem, vmem, vmem],
            out_specs=vmem,
        )(x3, packed["wbuf"], packed["vecs"])
    return out[:, 0, :O]


# ----------------------------------------------------------------------------
# Pure-JAX f32 reference (PyTorch semantics, eval-mode dropout)
# ----------------------------------------------------------------------------
def reference_forward(x, raw, *, nhead):
    W, D = raw["emb_w"].shape
    S = raw["pos"].shape[0]
    L = S - 1
    B = x.shape[0]
    H = nhead
    hd = D // H

    def ln(v, g, b):
        mu = jnp.mean(v, axis=-1, keepdims=True)
        var = jnp.mean(jnp.square(v - mu), axis=-1, keepdims=True)
        return (v - mu) / jnp.sqrt(var + LN_EPS) * g + b

    win = jnp.stack([x[:, i:i + W] for i in range(L)], axis=1)              # unfold
    e = win @ raw["emb_w"] + raw["emb_b"]                                   # (B, L, D)
    h = jnp.concatenate([jnp.broadcast_to(raw["cls"], (B, 1, D)), e], axis=1)
    h = h + raw["pos"][None, :, :]
    h = ln(h, raw["ln0_g"], raw["ln0_b"])

    wq = raw["wqkv"][:, 0:D]; wk = raw["wqkv"][:, D:2 * D]; wv = raw["wqkv"][:, 2 * D:]
    bq = raw["bqkv"][:, 0:D]; bk = raw["bqkv"][:, D:2 * D]; bv = raw["bqkv"][:, 2 * D:]
    q = h @ wq + bq
    k = h @ wk + bk
    v = h @ wv + bv

    def split(t):
        return t.reshape(B, S, H, hd).transpose(0, 2, 1, 3)                 # (B, H, S, hd)

    qh, kh, vh = split(q), split(k), split(v)
    sc = jnp.einsum('bhqd,bhkd->bhqk', qh, kh) / (hd ** 0.5)
    pr = jax.nn.softmax(sc, axis=-1)
    ctx = jnp.einsum('bhqk,bhkd->bhqd', pr, vh)
    ctx = ctx.transpose(0, 2, 1, 3).reshape(B, S, D)
    attn = ctx @ raw["wo"] + raw["bo"]
    h = ln(h + attn, raw["ln1_g"], raw["ln1_b"])
    ff = jnp.maximum(h @ raw["w1"] + raw["b1"], 0.0) @ raw["w2"] + raw["b2"]
    h = ln(h + ff, raw["ln2_g"], raw["ln2_b"])
    return h[:, 0, :] @ raw["wf"] + raw["bf"]


if __name__ == "__main__":
    # Small shapes consistent with the module's forward:
    #   input_size=24, window_size=17 -> new_seq_length = 8, S = 9
    B = 2
    input_size = 24
    window_size = 17
    d_model = 32
    nhead = 4            # head_dim = 8
    dim_ff = 64
    output_size = 6
    seq_plus_one = input_size - window_size + 1 + 1   # 9

    key = jax.random.PRNGKey(0)
    kx, kp = jax.random.split(key)
    x = jax.random.normal(kx, (B, input_size), dtype=jnp.float32)
    raw = make_params(kp, window_size, seq_plus_one, d_model, dim_ff, output_size)
    packed = pack_params(raw, nhead=nhead, input_size=input_size, batch_tile=B)

    out = transformer_classifier_forward(x, packed)
    out = jax.block_until_ready(out)

    assert out.shape == (B, output_size), out.shape
    assert bool(jnp.all(jnp.isfinite(out)))

    # Correctness vs. f32 reference (kernel uses bf16 MXU inputs + approx
    # softmax reciprocal, so compare with a loose tolerance).
    ref = reference_forward(x, raw, nhead=nhead)
    err = float(jnp.max(jnp.abs(out - ref)))
    assert err < 5e-2, f"kernel vs reference mismatch: max|diff|={err}"
    print("KERNEL_OK")
</pallas_src>

<mosaic_0001>
module attributes {stable_mosaic.version = 11 : i64} {
  func.func @transformer_cls_kernel(%arg0: memref<2x1x24xf32, #tpu.memory_space<vmem>>, %arg1: memref<512x216xbf16, #tpu.memory_space<vmem>>, %arg2: memref<58x216xf32, #tpu.memory_space<vmem>>, %arg3: memref<2x1x128xf32, #tpu.memory_space<vmem>>) attributes {dimension_semantics = [], scalar_prefetch = 0 : i64, scratch_operands = 0 : i64, tpu.core_type = #tpu.core_type<tc>} {
    %c0 = arith.constant 0 : index
    %c0_0 = arith.constant 0 : index
    %c0_1 = arith.constant 0 : index
    %0 = vector.load %arg0[%c0, %c0_0, %c0_1] : memref<2x1x24xf32, #tpu.memory_space<vmem>>, vector<2x1x24xf32>
    %1 = vector.shape_cast %0 : vector<2x1x24xf32> to vector<2x24xf32>
    %2 = vector.shape_cast %1 : vector<2x24xf32> to vector<2x1x24xf32>
    %3 = vector.shape_cast %2 : vector<2x1x24xf32> to vector<2x1x24xf32>
    %4 = vector.broadcast %3 : vector<2x1x24xf32> to vector<2x9x24xf32>
    %5 = vector.shape_cast %4 : vector<2x9x24xf32> to vector<18x24xf32>
    %c0_2 = arith.constant 0 : index
    %c0_3 = arith.constant 0 : index
    %6 = vector.load %arg1[%c0_2, %c0_3] : memref<512x216xbf16, #tpu.memory_space<vmem>>, vector<24x216xbf16>
    %c32 = arith.constant 32 : index
    %c0_4 = arith.constant 0 : index
    %7 = vector.load %arg1[%c32, %c0_4] : memref<512x216xbf16, #tpu.memory_space<vmem>>, vector<216x32xbf16>
    %c40 = arith.constant 40 : index
    %c0_5 = arith.constant 0 : index
    %8 = vector.load %arg2[%c40, %c0_5] : memref<58x216xf32, #tpu.memory_space<vmem>>, vector<18x216xf32>
    %9 = arith.truncf %5 : vector<18x24xf32> to vector<18x24xbf16>
    %cst = arith.constant dense<0.000000e+00> : vector<18x216xf32>
    %10 = tpu.matmul %9, %6, %cst {dimension_numbers = #tpu.dot_dimension_numbers<[1], [0], [0], [1], [0, 0, 1, 1], [], []>} : vector<18x24xbf16>, vector<24x216xbf16>, vector<18x216xf32> -> vector<18x216xf32>
    %11 = arith.mulf %10, %8 : vector<18x216xf32>
    %12 = arith.truncf %11 : vector<18x216xf32> to vector<18x216xbf16>
    %cst_6 = arith.constant dense<0.000000e+00> : vector<18x32xf32>
    %13 = tpu.matmul %12, %7, %cst_6 {dimension_numbers = #tpu.dot_dimension_numbers<[1], [0], [0], [1], [0, 0, 1, 1], [], []>} : vector<18x216xbf16>, vector<216x32xbf16>, vector<18x32xf32> -> vector<18x32xf32>
    %c0_7 = arith.constant 0 : index
    %c0_8 = arith.constant 0 : index
    %14 = vector.load %arg2[%c0_7, %c0_8] : memref<58x216xf32, #tpu.memory_space<vmem>>, vector<18x32xf32>
    %15 = arith.addf %13, %14 : vector<18x32xf32>
    %c18 = arith.constant 18 : index
    %c0_9 = arith.constant 0 : index
    %16 = vector.load %arg2[%c18, %c0_9] : memref<58x216xf32, #tpu.memory_space<vmem>>, vector<1x32xf32>
    %c19 = arith.constant 19 : index
    %c0_10 = arith.constant 0 : index
    %17 = vector.load %arg2[%c19, %c0_10] : memref<58x216xf32, #tpu.memory_space<vmem>>, vector<1x32xf32>
    %cst_11 = arith.constant dense<0.000000e+00> : vector<18xf32>
    %18 = vector.multi_reduction <add>, %15, %cst_11 [1] : vector<18x32xf32> to vector<18xf32>
    %19 = vector.shape_cast %18 : vector<18xf32> to vector<18x1xf32>
    %cst_12 = arith.constant 3.200000e+01 : f32
    %20 = vector.broadcast %cst_12 : f32 to vector<18x1xf32>
    %21 = arith.divf %19, %20 : vector<18x1xf32>
    %22 = vector.broadcast %21 : vector<18x1xf32> to vector<18x32xf32>
    %23 = arith.subf %15, %22 : vector<18x32xf32>
    %24 = arith.mulf %23, %23 : vector<18x32xf32>
    %cst_13 = arith.constant dense<0.000000e+00> : vector<18xf32>
    %25 = vector.multi_reduction <add>, %24, %cst_13 [1] : vector<18x32xf32> to vector<18xf32>
    %26 = vector.shape_cast %25 : vector<18xf32> to vector<18x1xf32>
    %cst_14 = arith.constant 3.200000e+01 : f32
    %27 = vector.broadcast %cst_14 : f32 to vector<18x1xf32>
    %28 = arith.divf %26, %27 : vector<18x1xf32>
    %29 = vector.broadcast %21 : vector<18x1xf32> to vector<18x32xf32>
    %30 = arith.subf %15, %29 : vector<18x32xf32>
    %cst_15 = arith.constant 9.99999974E-6 : f32
    %31 = vector.broadcast %cst_15 : f32 to vector<18x1xf32>
    %32 = arith.addf %28, %31 : vector<18x1xf32>
    %33 = math.rsqrt %32 : vector<18x1xf32>
    %34 = vector.broadcast %33 : vector<18x1xf32> to vector<18x32xf32>
    %35 = arith.mulf %30, %34 : vector<18x32xf32>
    %36 = vector.broadcast %16 : vector<1x32xf32> to vector<18x32xf32>
    %37 = arith.mulf %35, %36 : vector<18x32xf32>
    %38 = vector.broadcast %17 : vector<1x32xf32> to vector<18x32xf32>
    %39 = arith.addf %37, %38 : vector<18x32xf32>
    %40 = vector.shape_cast %39 : vector<18x32xf32> to vector<2x9x32xf32>
    %41 = vector.extract_strided_slice %40 {offsets = [0, 0, 0], sizes = [2, 1, 32], strides = [1, 1, 1]} : vector<2x9x32xf32> to vector<2x1x32xf32>
    %42 = vector.shape_cast %41 : vector<2x1x32xf32> to vector<2x32xf32>
    %c256 = arith.constant 256 : index
    %c0_16 = arith.constant 0 : index
    %43 = vector.load %arg1[%c256, %c0_16] : memref<512x216xbf16, #tpu.memory_space<vmem>>, vector<32x32xbf16>
    %c288 = arith.constant 288 : index
    %c0_17 = arith.constant 0 : index
    %44 = vector.load %arg1[%c288, %c0_17] : memref<512x216xbf16, #tpu.memory_space<vmem>>, vector<32x32xbf16>
    %c320 = arith.constant 320 : index
    %c0_18 = arith.constant 0 : index
    %45 = vector.load %arg1[%c320, %c0_18] : memref<512x216xbf16, #tpu.memory_space<vmem>>, vector<32x32xbf16>
    %c352 = arith.constant 352 : index
    %c0_19 = arith.constant 0 : index
    %46 = vector.load %arg1[%c352, %c0_19] : memref<512x216xbf16, #tpu.memory_space<vmem>>, vector<32x32xbf16>
    %47 = arith.truncf %39 : vector<18x32xf32> to vector<18x32xbf16>
    %cst_20 = arith.constant dense<0.000000e+00> : vector<18x32xf32>
    %48 = tpu.matmul %47, %44, %cst_20 {dimension_numbers = #tpu.dot_dimension_numbers<[1], [0], [0], [1], [0, 0, 1, 1], [], []>} : vector<18x32xbf16>, vector<32x32xbf16>, vector<18x32xf32> -> vector<18x32xf32>
    %c21 = arith.constant 21 : index
    %c0_21 = arith.constant 0 : index
    %49 = vector.load %arg2[%c21, %c0_21] : memref<58x216xf32, #tpu.memory_space<vmem>>, vector<1x32xf32>
    %50 = vector.broadcast %49 : vector<1x32xf32> to vector<18x32xf32>
    %51 = arith.addf %48, %50 : vector<18x32xf32>
    %cst_22 = arith.constant dense<0.000000e+00> : vector<18x32xf32>
    %52 = tpu.matmul %47, %45, %cst_22 {dimension_numbers = #tpu.dot_dimension_numbers<[1], [0], [0], [1], [0, 0, 1, 1], [], []>} : vector<18x32xbf16>, vector<32x32xbf16>, vector<18x32xf32> -> vector<18x32xf32>
    %c22 = arith.constant 22 : index
    %c0_23 = arith.constant 0 : index
    %53 = vector.load %arg2[%c22, %c0_23] : memref<58x216xf32, #tpu.memory_space<vmem>>, vector<1x32xf32>
    %54 = vector.broadcast %53 : vector<1x32xf32> to vector<18x32xf32>
    %55 = arith.addf %52, %54 : vector<18x32xf32>
    %56 = arith.truncf %42 : vector<2x32xf32> to vector<2x32xbf16>
    %cst_24 = arith.constant dense<0.000000e+00> : vector<2x32xf32>
    %57 = tpu.matmul %56, %43, %cst_24 {dimension_numbers = #tpu.dot_dimension_numbers<[1], [0], [0], [1], [0, 0, 1, 1], [], []>} : vector<2x32xbf16>, vector<32x32xbf16>, vector<2x32xf32> -> vector<2x32xf32>
    %c20 = arith.constant 20 : index
    %c0_25 = arith.constant 0 : index
    %58 = vector.load %arg2[%c20, %c0_25] : memref<58x216xf32, #tpu.memory_space<vmem>>, vector<1x32xf32>
    %59 = vector.broadcast %58 : vector<1x32xf32> to vector<2x32xf32>
    %60 = arith.addf %57, %59 : vector<2x32xf32>
    %c32_26 = arith.constant 32 : index
    %c0_27 = arith.constant 0 : index
    %61 = vector.load %arg2[%c32_26, %c0_27] : memref<58x216xf32, #tpu.memory_space<vmem>>, vector<4x32xf32>
    %c36 = arith.constant 36 : index
    %c0_28 = arith.constant 0 : index
    %62 = vector.load %arg2[%c36, %c0_28] : memref<58x216xf32, #tpu.memory_space<vmem>>, vector<4x32xf32>
    %63 = vector.shape_cast %60 : vector<2x32xf32> to vector<2x1x32xf32>
    %64 = vector.shape_cast %61 : vector<4x32xf32> to vector<1x4x32xf32>
    %65 = vector.broadcast %63 : vector<2x1x32xf32> to vector<2x4x32xf32>
    %66 = vector.broadcast %64 : vector<1x4x32xf32> to vector<2x4x32xf32>
    %67 = arith.mulf %65, %66 : vector<2x4x32xf32>
    %68 = vector.shape_cast %51 : vector<18x32xf32> to vector<2x9x32xf32>
    %69 = vector.shape_cast %55 : vector<18x32xf32> to vector<2x9x32xf32>
    %70 = arith.truncf %67 : vector<2x4x32xf32> to vector<2x4x32xbf16>
    %71 = arith.truncf %68 : vector<2x9x32xf32> to vector<2x9x32xbf16>
    "tpu.trace_start"() <{level = 10 : i32, message = "bhd,bsd->bhs"}> : () -> ()
    %cst_29 = arith.constant dense<0.000000e+00> : vector<2x4x9xf32>
    %72 = tpu.matmul %70, %71, %cst_29 {dimension_numbers = #tpu.dot_dimension_numbers<[2], [2], [1], [1], [0, 0, 0, 1, 1, 1], [0], [0]>} : vector<2x4x32xbf16>, vector<2x9x32xbf16>, vector<2x4x9xf32> -> vector<2x4x9xf32>
    "tpu.trace_stop"() : () -> ()
    %cst_30 = arith.constant dense<0xFF800000> : vector<2x4xf32>
    %73 = vector.multi_reduction <maximumf>, %72, %cst_30 [2] : vector<2x4x9xf32> to vector<2x4xf32>
    %74 = vector.shape_cast %73 : vector<2x4xf32> to vector<2x4x1xf32>
    %75 = vector.broadcast %74 : vector<2x4x1xf32> to vector<2x4x9xf32>
    %76 = arith.subf %72, %75 : vector<2x4x9xf32>
    %77 = math.exp %76 : vector<2x4x9xf32>
    %cst_31 = arith.constant dense<0.000000e+00> : vector<2x4xf32>
    %78 = vector.multi_reduction <add>, %77, %cst_31 [2] : vector<2x4x9xf32> to vector<2x4xf32>
    %79 = vector.shape_cast %78 : vector<2x4xf32> to vector<2x4x1xf32>
    %80 = tpu.reciprocal %79 {approx = true} : vector<2x4x1xf32> -> vector<2x4x1xf32>
    %81 = vector.broadcast %80 : vector<2x4x1xf32> to vector<2x4x9xf32>
    %82 = arith.mulf %77, %81 : vector<2x4x9xf32>
    %83 = arith.truncf %82 : vector<2x4x9xf32> to vector<2x4x9xbf16>
    %84 = arith.truncf %69 : vector<2x9x32xf32> to vector<2x9x32xbf16>
    "tpu.trace_start"() <{level = 10 : i32, message = "bhs,bsd->bhd"}> : () -> ()
    %cst_32 = arith.constant dense<0.000000e+00> : vector<2x4x32xf32>
    %85 = tpu.matmul %83, %84, %cst_32 {dimension_numbers = #tpu.dot_dimension_numbers<[2], [1], [1], [2], [0, 0, 0, 1, 1, 2], [0], [0]>} : vector<2x4x9xbf16>, vector<2x9x32xbf16>, vector<2x4x32xf32> -> vector<2x4x32xf32>
    "tpu.trace_stop"() : () -> ()
    %86 = vector.shape_cast %62 : vector<4x32xf32> to vector<1x4x32xf32>
    %87 = vector.broadcast %86 : vector<1x4x32xf32> to vector<2x4x32xf32>
    %88 = arith.mulf %85, %87 : vector<2x4x32xf32>
    %cst_33 = arith.constant dense<0.000000e+00> : vector<2x32xf32>
    %89 = vector.multi_reduction <add>, %88, %cst_33 [1] : vector<2x4x32xf32> to vector<2x32xf32>
    %90 = arith.truncf %89 : vector<2x32xf32> to vector<2x32xbf16>
    %cst_34 = arith.constant dense<0.000000e+00> : vector<2x32xf32>
    %91 = tpu.matmul %90, %46, %cst_34 {dimension_numbers = #tpu.dot_dimension_numbers<[1], [0], [0], [1], [0, 0, 1, 1], [], []>} : vector<2x32xbf16>, vector<32x32xbf16>, vector<2x32xf32> -> vector<2x32xf32>
    %c23 = arith.constant 23 : index
    %c0_35 = arith.constant 0 : index
    %92 = vector.load %arg2[%c23, %c0_35] : memref<58x216xf32, #tpu.memory_space<vmem>>, vector<1x32xf32>
    %93 = vector.broadcast %92 : vector<1x32xf32> to vector<2x32xf32>
    %94 = arith.addf %91, %93 : vector<2x32xf32>
    %95 = arith.addf %42, %94 : vector<2x32xf32>
    %c24 = arith.constant 24 : index
    %c0_36 = arith.constant 0 : index
    %96 = vector.load %arg2[%c24, %c0_36] : memref<58x216xf32, #tpu.memory_space<vmem>>, vector<1x32xf32>
    %c25 = arith.constant 25 : index
    %c0_37 = arith.constant 0 : index
    %97 = vector.load %arg2[%c25, %c0_37] : memref<58x216xf32, #tpu.memory_space<vmem>>, vector<1x32xf32>
    %cst_38 = arith.constant dense<0.000000e+00> : vector<2xf32>
    %98 = vector.multi_reduction <add>, %95, %cst_38 [1] : vector<2x32xf32> to vector<2xf32>
    %99 = vector.shape_cast %98 : vector<2xf32> to vector<2x1xf32>
    %cst_39 = arith.constant 3.200000e+01 : f32
    %100 = vector.broadcast %cst_39 : f32 to vector<2x1xf32>
    %101 = arith.divf %99, %100 : vector<2x1xf32>
    %102 = vector.broadcast %101 : vector<2x1xf32> to vector<2x32xf32>
    %103 = arith.subf %95, %102 : vector<2x32xf32>
    %104 = arith.mulf %103, %103 : vector<2x32xf32>
    %cst_40 = arith.constant dense<0.000000e+00> : vector<2xf32>
    %105 = vector.multi_reduction <add>, %104, %cst_40 [1] : vector<2x32xf32> to vector<2xf32>
    %106 = vector.shape_cast %105 : vector<2xf32> to vector<2x1xf32>
    %cst_41 = arith.constant 3.200000e+01 : f32
    %107 = vector.broadcast %cst_41 : f32 to vector<2x1xf32>
    %108 = arith.divf %106, %107 : vector<2x1xf32>
    %109 = vector.broadcast %101 : vector<2x1xf32> to vector<2x32xf32>
    %110 = arith.subf %95, %109 : vector<2x32xf32>
    %cst_42 = arith.constant 9.99999974E-6 : f32
    %111 = vector.broadcast %cst_42 : f32 to vector<2x1xf32>
    %112 = arith.addf %108, %111 : vector<2x1xf32>
    %113 = math.rsqrt %112 : vector<2x1xf32>
    %114 = vector.broadcast %113 : vector<2x1xf32> to vector<2x32xf32>
    %115 = arith.mulf %110, %114 : vector<2x32xf32>
    %116 = vector.broadcast %96 : vector<1x32xf32> to vector<2x32xf32>
    %117 = arith.mulf %115, %116 : vector<2x32xf32>
    %118 = vector.broadcast %97 : vector<1x32xf32> to vector<2x32xf32>
    %119 = arith.addf %117, %118 : vector<2x32xf32>
    %c384 = arith.constant 384 : index
    %c0_43 = arith.constant 0 : index
    %120 = vector.load %arg1[%c384, %c0_43] : memref<512x216xbf16, #tpu.memory_space<vmem>>, vector<32x64xbf16>
    %c416 = arith.constant 416 : index
    %c0_44 = arith.constant 0 : index
    %121 = vector.load %arg1[%c416, %c0_44] : memref<512x216xbf16, #tpu.memory_space<vmem>>, vector<64x32xbf16>
    %122 = arith.truncf %119 : vector<2x32xf32> to vector<2x32xbf16>
    %cst_45 = arith.constant dense<0.000000e+00> : vector<2x64xf32>
    %123 = tpu.matmul %122, %120, %cst_45 {dimension_numbers = #tpu.dot_dimension_numbers<[1], [0], [0], [1], [0, 0, 1, 1], [], []>} : vector<2x32xbf16>, vector<32x64xbf16>, vector<2x64xf32> -> vector<2x64xf32>
    %c26 = arith.constant 26 : index
    %c0_46 = arith.constant 0 : index
    %124 = vector.load %arg2[%c26, %c0_46] : memref<58x216xf32, #tpu.memory_space<vmem>>, vector<1x64xf32>
    %125 = vector.broadcast %124 : vector<1x64xf32> to vector<2x64xf32>
    %126 = arith.addf %123, %125 : vector<2x64xf32>
    %cst_47 = arith.constant 0.000000e+00 : f32
    %127 = vector.broadcast %cst_47 : f32 to vector<2x64xf32>
    %128 = arith.maximumf %126, %127 : vector<2x64xf32>
    %129 = arith.truncf %128 : vector<2x64xf32> to vector<2x64xbf16>
    %cst_48 = arith.constant dense<0.000000e+00> : vector<2x32xf32>
    %130 = tpu.matmul %129, %121, %cst_48 {dimension_numbers = #tpu.dot_dimension_numbers<[1], [0], [0], [1], [0, 0, 1, 1], [], []>} : vector<2x64xbf16>, vector<64x32xbf16>, vector<2x32xf32> -> vector<2x32xf32>
    %c27 = arith.constant 27 : index
    %c0_49 = arith.constant 0 : index
    %131 = vector.load %arg2[%c27, %c0_49] : memref<58x216xf32, #tpu.memory_space<vmem>>, vector<1x32xf32>
    %132 = vector.broadcast %131 : vector<1x32xf32> to vector<2x32xf32>
    %133 = arith.addf %130, %132 : vector<2x32xf32>
    %134 = arith.addf %119, %133 : vector<2x32xf32>
    %c28 = arith.constant 28 : index
    %c0_50 = arith.constant 0 : index
    %135 = vector.load %arg2[%c28, %c0_50] : memref<58x216xf32, #tpu.memory_space<vmem>>, vector<1x32xf32>
    %c29 = arith.constant 29 : index
    %c0_51 = arith.constant 0 : index
    %136 = vector.load %arg2[%c29, %c0_51] : memref<58x216xf32, #tpu.memory_space<vmem>>, vector<1x32xf32>
    %cst_52 = arith.constant dense<0.000000e+00> : vector<2xf32>
    %137 = vector.multi_reduction <add>, %134, %cst_52 [1] : vector<2x32xf32> to vector<2xf32>
    %138 = vector.shape_cast %137 : vector<2xf32> to vector<2x1xf32>
    %cst_53 = arith.constant 3.200000e+01 : f32
    %139 = vector.broadcast %cst_53 : f32 to vector<2x1xf32>
    %140 = arith.divf %138, %139 : vector<2x1xf32>
    %141 = vector.broadcast %140 : vector<2x1xf32> to vector<2x32xf32>
    %142 = arith.subf %134, %141 : vector<2x32xf32>
    %143 = arith.mulf %142, %142 : vector<2x32xf32>
    %cst_54 = arith.constant dense<0.000000e+00> : vector<2xf32>
    %144 = vector.multi_reduction <add>, %143, %cst_54 [1] : vector<2x32xf32> to vector<2xf32>
    %145 = vector.shape_cast %144 : vector<2xf32> to vector<2x1xf32>
    %cst_55 = arith.constant 3.200000e+01 : f32
    %146 = vector.broadcast %cst_55 : f32 to vector<2x1xf32>
    %147 = arith.divf %145, %146 : vector<2x1xf32>
    %148 = vector.broadcast %140 : vector<2x1xf32> to vector<2x32xf32>
    %149 = arith.subf %134, %148 : vector<2x32xf32>
    %cst_56 = arith.constant 9.99999974E-6 : f32
    %150 = vector.broadcast %cst_56 : f32 to vector<2x1xf32>
    %151 = arith.addf %147, %150 : vector<2x1xf32>
    %152 = math.rsqrt %151 : vector<2x1xf32>
    %153 = vector.broadcast %152 : vector<2x1xf32> to vector<2x32xf32>
    %154 = arith.mulf %149, %153 : vector<2x32xf32>
    %155 = vector.broadcast %135 : vector<1x32xf32> to vector<2x32xf32>
    %156 = arith.mulf %154, %155 : vector<2x32xf32>
    %157 = vector.broadcast %136 : vector<1x32xf32> to vector<2x32xf32>
    %158 = arith.addf %156, %157 : vector<2x32xf32>
    %c480 = arith.constant 480 : index
    %c0_57 = arith.constant 0 : index
    %159 = vector.load %arg1[%c480, %c0_57] : memref<512x216xbf16, #tpu.memory_space<vmem>>, vector<32x128xbf16>
    %160 = arith.truncf %158 : vector<2x32xf32> to vector<2x32xbf16>
    %cst_58 = arith.constant dense<0.000000e+00> : vector<2x128xf32>
    %161 = tpu.matmul %160, %159, %cst_58 {dimension_numbers = #tpu.dot_dimension_numbers<[1], [0], [0], [1], [0, 0, 1, 1], [], []>} : vector<2x32xbf16>, vector<32x128xbf16>, vector<2x128xf32> -> vector<2x128xf32>
    %c30 = arith.constant 30 : index
    %c0_59 = arith.constant 0 : index
    %162 = vector.load %arg2[%c30, %c0_59] : memref<58x216xf32, #tpu.memory_space<vmem>>, vector<1x128xf32>
    %163 = vector.broadcast %162 : vector<1x128xf32> to vector<2x128xf32>
    %164 = arith.addf %161, %163 : vector<2x128xf32>
    %165 = vector.shape_cast %164 : vector<2x128xf32> to vector<2x1x128xf32>
    %c0_60 = arith.constant 0 : index
    %c0_61 = arith.constant 0 : index
    %c0_62 = arith.constant 0 : index
    %166 = vector.load %arg3[%c0_60, %c0_61, %c0_62] : memref<2x1x128xf32, #tpu.memory_space<vmem>>, vector<2x1x128xf32>
    tpu.vector_store %arg3[%c0_60, %c0_61, %c0_62], %165 {strides = array<i32>} : memref<2x1x128xf32, #tpu.memory_space<vmem>>, vector<2x1x128xf32>,
    return
  }
}

</mosaic_0001>

<llo_original>
// kernel: tpu_custom_call.1
$region0: #{tpu_custom_call.1}
  #allocation0 [shape = 'u32[]', space=smem, size = 0x4, offset = 0x4, fixed_abs, tag = 'smem constant byte address 0x4 - core index']
  #allocation1 [shape = 'u32[144,128]{1,0:T(1,128)}', space=vmem, size = 0x12000, scoped, tag = 'internal scratch']
  %s0 = inlined_call_operand.vmem [shape: f32[2,1,24], index: 0, kind: input, shape index: {}]
  %s1 = inlined_call_operand.vmem [shape: bf16[512,216], index: 1, kind: input, shape index: {}]
  %s2 = inlined_call_operand.vmem [shape: f32[58,216], index: 2, kind: input, shape index: {}]
  %s3 = inlined_call_operand.hbm [shape: f32[2,1,128], index: 3, kind: output, shape index: {}]
  %s4 = sld [smem:[#allocation0]]
  $region22: #{tpu_custom_call.1} parent=0
    _
  %s6 = ssub.s32 1, %s4
  %s7 = scalar_select 0, %s6, %s4
  $region1: #{tpu_custom_call.1} parent=0
    #allocation2 [shape = 'u8[1024]{0}', space=vmem, size = 0x400, scoped, tag = 'output window, operand 0, single buffered']
    #allocation3 [shape = 's32[1]{0}', space=sflag, size = 0x4, scoped, tag = 'scoped memory for tpu_custom_call.1']
    %8 = vsyncpa [#allocation3], 0
    // Predicated region
    $region2: #{tpu_custom_call.1} parent=1 // pred_check
      _
    $region3: #{tpu_custom_call.1} parent=1 // pred_check_branch
      %10 = sbr.rel (0) target = $region5
    $region4: #{tpu_custom_call.1} parent=1 // pred_region
      _
    $region5: #{tpu_custom_call.1} parent=1 // pred_fallthru
      _
    // Predicated region
    $region6: #{tpu_custom_call.1} parent=1 // pred_check
      _
    $region7: #{tpu_custom_call.1} parent=1 // pred_check_branch
      %12 = sbr.rel (0) target = $region9
    $region8: #{tpu_custom_call.1} parent=1 // pred_region
      _
    $region9: #{tpu_custom_call.1} parent=1 // pred_fallthru
      _
    // Predicated region
    $region10: #{tpu_custom_call.1} parent=1 // pred_check
      _
    $region11: #{tpu_custom_call.1} parent=1 // pred_check_branch
      %14 = sbr.rel (0) target = $region13
    $region12: #{tpu_custom_call.1} parent=1 // pred_region
      _
    $region13: #{tpu_custom_call.1} parent=1 // pred_fallthru
      _
    %v16 = vld [vmem:[%s0] sm:$0x1]
    %v17 = vld [vmem:[%s0 + $0x1] sm:$0x1]
    %v20 = vlaneseq
    %v21 = vshrl.u32 %v20, 7
    %v22 = vsub.s32 0, %v21
    %v23 = vrot.slane %v16, %v22
    %v24 = vlaneseq
    %v25 = vshrl.u32 %v24, 7
    %v26 = vsub.s32 0, %v25
    %v27 = vrot.slane %v17, %v26
    %v28 = vcombine.high %v23, %v23
    %v30 = vunpack.c.l.s4 1966171168
    %v31 = vunpack.c.0.s8 %v30
    %v32 = vlaneseq
    %v33 = vshrl.u32 %v32, 7
    %v34 = vsub.s32 %v31, %v33
    %v35 = vrot.slane %v23, %v34
    %v37 = vunpack.c.l.s4 1966171168
    %v38 = vunpack.c.0.s8 %v37
    %v39 = vlaneseq
    %v40 = vshrl.u32 %v39, 7
    %v41 = vsub.s32 %v38, %v40
    %v42 = vrot.slane %v28, %v41
    %v43 = vcombine.high %v35, %v35
    %v44 = vcombine.high %v42, %v42
    %v46 = vunpack.c.l.s4 1966171168
    %v47 = vunpack.c.0.s8 %v46
    %v48 = vlaneseq
    %v49 = vshrl.u32 %v48, 7
    %v50 = vsub.s32 %v47, %v49
    %v51 = vrot.slane %v35, %v50
    %v53 = vunpack.c.l.s4 1966171168
    %v54 = vunpack.c.0.s8 %v53
    %v55 = vlaneseq
    %v56 = vshrl.u32 %v55, 7
    %v57 = vsub.s32 %v54, %v56
    %v58 = vrot.slane %v42, %v57
    %v60 = vunpack.c.l.s4 1966171168
    %v61 = vunpack.c.0.s8 %v60
    %v62 = vlaneseq
    %v63 = vshrl.u32 %v62, 7
    %v64 = vsub.s32 %v61, %v63
    %v65 = vrot.slane %v43, %v64
    %v67 = vunpack.c.l.s4 1966171168
    %v68 = vunpack.c.0.s8 %v67
    %v69 = vlaneseq
    %v70 = vshrl.u32 %v69, 7
    %v71 = vsub.s32 %v68, %v70
    %v72 = vrot.slane %v44, %v71
    %v73 = vcombine.high %v51, %v51
    %v74 = vcombine.high %v58, %v58
    %v75 = vcombine.high %v65, %v65
    %v76 = vcombine.high %v72, %v72
    %v77 = vcombine.high %v27, %v27
    %v79 = vunpack.c.l.s4 1966171168
    %v80 = vunpack.c.0.s8 %v79
    %v81 = vlaneseq
    %v82 = vshrl.u32 %v81, 7
    %v83 = vsub.s32 %v80, %v82
    %v84 = vrot.slane %v27, %v83
    %v86 = vunpack.c.l.s4 1966171168
    %v87 = vunpack.c.0.s8 %v86
    %v88 = vlaneseq
    %v89 = vshrl.u32 %v88, 7
    %v90 = vsub.s32 %v87, %v89
    %v91 = vrot.slane %v77, %v90
    %v92 = vcombine.high %v84, %v84
    %v93 = vcombine.high %v91, %v91
    %v95 = vunpack.c.l.s4 1966171168
    %v96 = vunpack.c.0.s8 %v95
    %v97 = vlaneseq
    %v98 = vshrl.u32 %v97, 7
    %v99 = vsub.s32 %v96, %v98
    %v100 = vrot.slane %v84, %v99
    %v102 = vunpack.c.l.s4 1966171168
    %v103 = vunpack.c.0.s8 %v102
    %v104 = vlaneseq
    %v105 = vshrl.u32 %v104, 7
    %v106 = vsub.s32 %v103, %v105
    %v107 = vrot.slane %v91, %v106
    %v109 = vunpack.c.l.s4 1966171168
    %v110 = vunpack.c.0.s8 %v109
    %v111 = vlaneseq
    %v112 = vshrl.u32 %v111, 7
    %v113 = vsub.s32 %v110, %v112
    %v114 = vrot.slane %v92, %v113
    %v116 = vunpack.c.l.s4 1966171168
    %v117 = vunpack.c.0.s8 %v116
    %v118 = vlaneseq
    %v119 = vshrl.u32 %v118, 7
    %v120 = vsub.s32 %v117, %v119
    %v121 = vrot.slane %v93, %v120
    %v122 = vcombine.high %v100, %v100
    %v123 = vcombine.high %v107, %v107
    %v124 = vcombine.high %v114, %v114
    %v125 = vcombine.high %v121, %v121
    %v126 = vld [vmem:[%s1] sm:$0xff]
    %v127 = vld [vmem:[%s1 + $0x8] sm:$0xff]
    %v128 = vld [vmem:[%s1 + $0x10] sm:$0xff]
    %v129 = vld [vmem:[%s1 + $0x20] sm:$0xf]
    %v130 = vld [vmem:[%s1 + $0x28] sm:$0xf]
    %v131 = vld [vmem:[%s1 + $0x30] sm:$0xf]
    %v132 = vld [vmem:[%s1 + $0x38] sm:$0xf]
    %v133 = vld [vmem:[%s1 + $0x40] sm:$0xf]
    %v134 = vld [vmem:[%s1 + $0x48] sm:$0xf]
    %v135 = vld [vmem:[%s1 + $0x50] sm:$0xf]
    %v136 = vld [vmem:[%s1 + $0x58] sm:$0xf]
    %v137 = vld [vmem:[%s1 + $0x60] sm:$0xf]
    %v138 = vld [vmem:[%s1 + $0x68] sm:$0xf]
    %v139 = vld [vmem:[%s1 + $0x70] sm:$0xf]
    %v140 = vld [vmem:[%s1 + $0x78] sm:$0xf]
    %v141 = vld [vmem:[%s1 + $0x80] sm:$0xf]
    %v142 = vld [vmem:[%s1 + $0x88] sm:$0xf]
    %v143 = vld [vmem:[%s1 + $0x90] sm:$0xf]
    %v144 = vld [vmem:[%s1 + $0x98] sm:$0xf]
    %v145 = vld [vmem:[%s1 + $0xa0] sm:$0xf]
    %v146 = vld [vmem:[%s1 + $0xa8] sm:$0xf]
    %v147 = vld [vmem:[%s1 + $0xb0] sm:$0xf]
    %v148 = vld [vmem:[%s1 + $0xb8] sm:$0xf]
    %v149 = vld [vmem:[%s1 + $0xc0] sm:$0xf]
    %v150 = vld [vmem:[%s1 + $0xc8] sm:$0xf]
    %v151 = vld [vmem:[%s1 + $0xd0] sm:$0xf]
    %v152 = vld [vmem:[%s1 + $0xd8] sm:$0xf]
    %v153 = vld [vmem:[%s1 + $0xe0] sm:$0xf]
    %v154 = vld [vmem:[%s1 + $0xe8] sm:$0xf]
    %v155 = vld [vmem:[%s1 + $0xf0] sm:$0xf]
    %v156 = vld [vmem:[%s2 + $0x50] sm:$0xff]
    %v157 = vld [vmem:[%s2 + $0x58] sm:$0xff]
    %v158 = vld [vmem:[%s2 + $0x60] sm:$0xff]
    %v159 = vld [vmem:[%s2 + $0x68] sm:$0xff]
    %v160 = vld [vmem:[%s2 + $0x70] sm:$0x3]
    %v161 = vld [vmem:[%s2 + $0x78] sm:$0x3]
    %v162 = vcombine.low %v51, %v65
    %v163 = vcombine.low %v73, %v75
    %v164 = vcombine.low %v58, %v72
    %v165 = vcombine.low %v74, %v76
    %v167 = vunpack.c.l.s4 1966171168
    %v168 = vunpack.c.0.s8 %v167
    %v169 = vlaneseq
    %v170 = vshrl.u32 %v169, 7
    %v171 = vsub.s32 %v168, %v170
    %v172 = vrot.slane %v162, %v171
    %v174 = vunpack.c.l.s4 1966171168
    %v175 = vunpack.c.0.s8 %v174
    %v176 = vlaneseq
    %v177 = vshrl.u32 %v176, 7
    %v178 = vsub.s32 %v175, %v177
    %v179 = vrot.slane %v163, %v178
    %v181 = vunpack.c.l.s4 1966171168
    %v182 = vunpack.c.0.s8 %v181
    %v183 = vlaneseq
    %v184 = vshrl.u32 %v183, 7
    %v185 = vsub.s32 %v182, %v184
    %v186 = vrot.slane %v164, %v185
    %v188 = vunpack.c.l.s4 1966171168
    %v189 = vunpack.c.0.s8 %v188
    %v190 = vlaneseq
    %v191 = vshrl.u32 %v190, 7
    %v192 = vsub.s32 %v189, %v191
    %v193 = vrot.slane %v165, %v192
    %v194 = vcombine.low %v172, %v179
    %v195 = vcombine.low %v186, %v193
    %v197 = vunpack.c.l.s4 1966171168
    %v198 = vunpack.c.0.s8 %v197
    %v199 = vlaneseq
    %v200 = vshrl.u32 %v199, 7
    %v201 = vsub.s32 %v198, %v200
    %v202 = vrot.slane %v194, %v201
    %v204 = vunpack.c.l.s4 1966171168
    %v205 = vunpack.c.0.s8 %v204
    %v206 = vlaneseq
    %v207 = vshrl.u32 %v206, 7
    %v208 = vsub.s32 %v205, %v207
    %v209 = vrot.slane %v195, %v208
    %v210 = vcombine.low %v202, %v209
    %v211 = vcombine.low %v51, %v100
    %v212 = vcombine.low %v114, %v122
    %v213 = vcombine.low %v124, %v107
    %v214 = vcombine.low %v121, %v123
    %v216 = vunpack.c.l.s4 1966171168
    %v217 = vunpack.c.0.s8 %v216
    %v218 = vlaneseq
    %v219 = vshrl.u32 %v218, 7
    %v220 = vsub.s32 %v217, %v219
    %v221 = vrot.slane %v211, %v220
    %v223 = vunpack.c.l.s4 1966171168
    %v224 = vunpack.c.0.s8 %v223
    %v225 = vlaneseq
    %v226 = vshrl.u32 %v225, 7
    %v227 = vsub.s32 %v224, %v226
    %v228 = vrot.slane %v212, %v227
    %v230 = vunpack.c.l.s4 1966171168
    %v231 = vunpack.c.0.s8 %v230
    %v232 = vlaneseq
    %v233 = vshrl.u32 %v232, 7
    %v234 = vsub.s32 %v231, %v233
    %v235 = vrot.slane %v213, %v234
    %v237 = vunpack.c.l.s4 1966171168
    %v238 = vunpack.c.0.s8 %v237
    %v239 = vlaneseq
    %v240 = vshrl.u32 %v239, 7
    %v241 = vsub.s32 %v238, %v240
    %v242 = vrot.slane %v214, %v241
    %v243 = vcombine.low %v221, %v228
    %v244 = vcombine.low %v235, %v242
    %v246 = vunpack.c.l.s4 1966171168
    %v247 = vunpack.c.0.s8 %v246
    %v248 = vlaneseq
    %v249 = vshrl.u32 %v248, 7
    %v250 = vsub.s32 %v247, %v249
    %v251 = vrot.slane %v243, %v250
    %v253 = vunpack.c.l.s4 1966171168
    %v254 = vunpack.c.0.s8 %v253
    %v255 = vlaneseq
    %v256 = vshrl.u32 %v255, 7
    %v257 = vsub.s32 %v254, %v256
    %v258 = vrot.slane %v244, %v257
    %v259 = vcombine.low %v251, %v258
    %v260 = vcombine.low %v125, %v100
    %v262 = vunpack.c.l.s4 1966171168
    %v263 = vunpack.c.0.s8 %v262
    %v264 = vlaneseq
    %v265 = vshrl.u32 %v264, 7
    %v266 = vsub.s32 %v263, %v265
    %v267 = vrot.slane %v260, %v266
    %v269 = vunpack.c.l.s4 1966171168
    %v270 = vunpack.c.0.s8 %v269
    %v271 = vlaneseq
    %v272 = vshrl.u32 %v271, 7
    %v273 = vsub.s32 %v270, %v272
    %v274 = vrot.slane %v267, %v273
    %v278 = vpack.c.bf16 %v259, %v210
    %v279 = vpack.c.bf16 %v274, %v274
    %v283 = vunpack.c.l.b16 %v126
    %v284 = vunpack.c.h.b16 %v126
    %v285 = vunpack.c.l.b16 %v127
    %v286 = vunpack.c.h.b16 %v127
    %v287 = vunpack.c.l.b16 %v128
    %v288 = vunpack.c.h.b16 %v128
    %v289 = vpack.c.b16 %v285, %v283
    %v290 = vpack.c.b16 %v286, %v284
    %v291 = vpack.c.b16 %v287, %v287
    %v292 = vpack.c.b16 %v288, %v288
    %vm295 = vcmask 195584
    %v297 = vsel %vm295, %v278, 0
    %v300 = vsel %vm295, %v279, 0
    %vm302 = vcmask 1043456
    %v304 = vsel %vm302, %v291, 0
    %v307 = vsel %vm302, %v292, 0
    %309 = vmatprep.subr.bf16.mxu0 %v290
    %310 = vmatpush1.bf16.msra.mxu0 %v289
    %311 = vmatprep.subr.bf16.mxu0 %v307
    %312 = vmatpush1.bf16.msra.mxu0 %v304
    %313 = vmatprep.subr.bf16.mxu0 0
    %314 = vmatpush1.bf16.msra.mxu0 0
    %315 = vmatprep.subr.bf16.mxu0 0
    %316 = vmatpush1.bf16.msra.mxu0 0
    %317 = vmatprep.subr.bf16.mxu0 0
    %318 = vmatpush1.bf16.msra.mxu0 0
    %319 = vmatprep.subr.bf16.mxu0 0
    %320 = vmatpush1.bf16.msra.mxu0 0
    %321 = vmatprep.subr.bf16.mxu0 0
    %322 = vmatpush1.bf16.msra.mxu0 0
    %323 = vmatprep.subr.bf16.mxu0 0
    %324 = vmatpush1.bf16.msra.mxu0 0
    %325 = vmatprep.subr.bf16.mxu0 0
    %326 = vmatpush1.bf16.msra.mxu0 0
    %327 = vmatprep.subr.bf16.mxu0 0
    %328 = vmatpush1.bf16.msra.mxu0 0
    %329 = vmatprep.subr.bf16.mxu0 0
    %330 = vmatpush1.bf16.msra.mxu0 0
    %331 = vmatprep.subr.bf16.mxu0 0
    %332 = vmatpush1.bf16.msra.mxu0 0
    %333 = vmatprep.subr.bf16.mxu0 0
    %334 = vmatpush1.bf16.msra.mxu0 0
    %335 = vmatprep.subr.bf16.mxu0 0
    %336 = vmatpush1.bf16.msra.mxu0 0
    %337 = vmatprep.subr.bf16.mxu0 0
    %338 = vmatpush1.bf16.msra.mxu0 0
    %339 = vmatprep.subr.bf16.mxu0 0
    %340 = vmatpush1.bf16.msra.mxu0 0
    %341 = vmatprep.mubr.bf16.mxu0 0
    %342 = vmatmul.mubr.bf16.gmra.mrb[0].mxu0 %v297
    %v343 = vpop.f32.mrb[0].mxu0
    %v344 = vadd.f32 0.0, %v343
    %v345 = vpop.f32.mrb[0].mxu0
    %v346 = vadd.f32 0.0, %v345
    %v347 = vpop.f32.mrb[0].mxu0
    %v348 = vadd.f32 0.0, %v347
    %v349 = vpop.f32.mrb[0].mxu0
    %v350 = vadd.f32 0.0, %v349
    %351 = vmatprep.mubr.bf16.mxu0 0
    %352 = vmatmul.mubr.bf16.gmra.mrb[0].mxu0 %v300
    %v353 = vpop.f32.mrb[0].mxu0
    %v354 = vadd.f32 0.0, %v353
    %v355 = vpop.f32.mrb[0].mxu0
    %v356 = vadd.f32 0.0, %v355
    %v357 = vpop.f32.mrb[0].mxu0
    %v358 = vpop.f32.mrb[0].mxu0
    %359 = vdwg.mxu0
    %v360 = vmul.f32 %v344, %v156
    %v361 = vmul.f32 %v346, %v157
    %v362 = vmul.f32 %v348, %v158
    %v363 = vmul.f32 %v350, %v159
    %v364 = vmul.f32 %v354, %v160
    %v365 = vmul.f32 %v356, %v161
    %v366 = vpack.c.bf16 %v362, %v360
    %v367 = vpack.c.bf16 %v363, %v361
    %v368 = vpack.c.bf16 %v364, %v364
    %v369 = vpack.c.bf16 %v365, %v365
    %v370 = vld [vmem:[%s2] sm:$0xff]
    %v371 = vld [vmem:[%s2 + $0x10] sm:$0xff]
    %v372 = vld [vmem:[%s2 + $0x20] sm:$0x3]
    %v400 = vunpack.c.l.b16 %v129
    %v401 = vunpack.c.l.b16 %v130
    %v402 = vunpack.c.l.b16 %v131
    %v403 = vunpack.c.l.b16 %v132
    %v404 = vunpack.c.l.b16 %v133
    %v405 = vunpack.c.l.b16 %v134
    %v406 = vunpack.c.l.b16 %v135
    %v407 = vunpack.c.l.b16 %v136
    %v408 = vunpack.c.l.b16 %v137
    %v409 = vunpack.c.l.b16 %v138
    %v410 = vunpack.c.l.b16 %v139
    %v411 = vunpack.c.l.b16 %v140
    %v412 = vunpack.c.l.b16 %v141
    %v413 = vunpack.c.l.b16 %v142
    %v414 = vunpack.c.l.b16 %v143
    %v415 = vunpack.c.l.b16 %v144
    %v416 = vunpack.c.l.b16 %v145
    %v417 = vunpack.c.l.b16 %v146
    %v418 = vunpack.c.l.b16 %v147
    %v419 = vunpack.c.l.b16 %v148
    %v420 = vunpack.c.l.b16 %v149
    %v421 = vunpack.c.l.b16 %v150
    %v422 = vunpack.c.l.b16 %v151
    %v423 = vunpack.c.l.b16 %v152
    %v424 = vunpack.c.l.b16 %v153
    %v425 = vunpack.c.l.b16 %v154
    %v426 = vunpack.c.l.b16 %v155
    %v427 = vpack.c.b16 %v401, %v400
    %v428 = vpack.c.b16 %v403, %v402
    %v429 = vpack.c.b16 %v405, %v404
    %v430 = vpack.c.b16 %v407, %v406
    %v431 = vpack.c.b16 %v409, %v408
    %v432 = vpack.c.b16 %v411, %v410
    %v433 = vpack.c.b16 %v413, %v412
    %v434 = vpack.c.b16 %v415, %v414
    %v435 = vpack.c.b16 %v417, %v416
    %v436 = vpack.c.b16 %v419, %v418
    %v437 = vpack.c.b16 %v421, %v420
    %v438 = vpack.c.b16 %v423, %v422
    %v439 = vpack.c.b16 %v425, %v424
    %v440 = vpack.c.b16 %v426, %v426
    %vm454 = vcmask 719872
    %v456 = vsel %vm454, %v367, 0
    %v459 = vsel %vm454, %v369, 0
    %v462 = vsel %vm302, %v440, 0
    %464 = vmatprep.subr.bf16.mxu0 0
    %465 = vmatpush1.bf16.msra.mxu0 %v427
    %466 = vmatprep.subr.bf16.mxu0 0
    %467 = vmatpush1.bf16.msra.mxu0 %v428
    %468 = vmatprep.subr.bf16.mxu0 0
    %469 = vmatpush1.bf16.msra.mxu0 %v429
    %470 = vmatprep.subr.bf16.mxu0 0
    %471 = vmatpush1.bf16.msra.mxu0 %v430
    %472 = vmatprep.subr.bf16.mxu0 0
    %473 = vmatpush1.bf16.msra.mxu0 %v431
    %474 = vmatprep.subr.bf16.mxu0 0
    %475 = vmatpush1.bf16.msra.mxu0 %v432
    %476 = vmatprep.subr.bf16.mxu0 0
    %477 = vmatpush1.bf16.msra.mxu0 %v433
    %478 = vmatprep.subr.bf16.mxu0 0
    %479 = vmatpush1.bf16.msra.mxu0 %v434
    %480 = vmatprep.subr.bf16.mxu0 0
    %481 = vmatpush1.bf16.msra.mxu0 %v435
    %482 = vmatprep.subr.bf16.mxu0 0
    %483 = vmatpush1.bf16.msra.mxu0 %v436
    %484 = vmatprep.subr.bf16.mxu0 0
    %485 = vmatpush1.bf16.msra.mxu0 %v437
    %486 = vmatprep.subr.bf16.mxu0 0
    %487 = vmatpush1.bf16.msra.mxu0 %v438
    %488 = vmatprep.subr.bf16.mxu0 0
    %489 = vmatpush1.bf16.msra.mxu0 %v439
    %490 = vmatprep.subr.bf16.mxu0 0
    %491 = vmatpush1.bf16.msra.mxu0 %v462
    %492 = vmatprep.subr.bf16.mxu0 0
    %493 = vmatpush1.bf16.msra.mxu0 0
    %494 = vmatprep.subr.bf16.mxu0 0
    %495 = vmatpush1.bf16.msra.mxu0 0
    %496 = vmatprep.mubr.bf16.mxu0 %v456
    %497 = vmatmul.mubr.bf16.gmra.mrb[0].mxu0 %v366
    %v498 = vpop.f32.mrb[0].mxu0
    %v499 = vadd.f32 %v370, %v498
    %v500 = vpop.f32.mrb[0].mxu0
    %v501 = vpop.f32.mrb[0].mxu0
    %v502 = vadd.f32 %v371, %v501
    %v503 = vpop.f32.mrb[0].mxu0
    %504 = vmatprep.mubr.bf16.mxu0 %v459
    %505 = vmatmul.mubr.bf16.gmra.mrb[0].mxu0 %v368
    %v506 = vpop.f32.mrb[0].mxu0
    %v507 = vadd.f32 %v372, %v506
    %v508 = vpop.f32.mrb[0].mxu0
    %v509 = vpop.f32.mrb[0].mxu0
    %v510 = vpop.f32.mrb[0].mxu0
    %511 = vdwg.mxu0
    %v512 = vld [vmem:[%s2 + $0x22] ss:$0 sm:$0xff]
    %v513 = vld [vmem:[%s2 + $0x23] ss:$0 sm:$0xff]
    %vm514 = vcmask 261120
    %v515 = vsel %vm514, %v499, 0.0
    %516 = vadd.xlane.f32.xlu0 %v515
    %v517 = vpop.xlane.xlu0 %516
    %v518 = vsel %vm514, %v502, 0.0
    %519 = vadd.xlane.f32.xlu0 %v518
    %v520 = vpop.xlane.xlu0 %519
    %vm521 = vcmask 254976
    %v522 = vsel %vm521, %v507, 0.0
    %523 = vadd.xlane.f32.xlu0 %v522
    %v524 = vpop.xlane.xlu0 %523
    %v525 = vrcp.pop 32.0
    %v526 = vmul.f32 %v517, %v525
    %v527 = vmul.f32 %v520, %v525
    %v528 = vmul.f32 %v524, %v525
    %v529 = vsub.f32 %v499, %v526
    %v530 = vsub.f32 %v502, %v527
    %v531 = vsub.f32 %v507, %v528
    %v532 = vmul.f32 %v529, %v529
    %v533 = vmul.f32 %v530, %v530
    %v534 = vmul.f32 %v531, %v531
    %v535 = vsel %vm514, %v532, 0.0
    %536 = vadd.xlane.f32.xlu0 %v535
    %v537 = vpop.xlane.xlu0 %536
    %v538 = vsel %vm514, %v533, 0.0
    %539 = vadd.xlane.f32.xlu0 %v538
    %v540 = vpop.xlane.xlu0 %539
    %v541 = vsel %vm521, %v534, 0.0
    %542 = vadd.xlane.f32.xlu0 %v541
    %v543 = vpop.xlane.xlu0 %542
    %v544 = vmul.f32 %v537, %v525
    %v545 = vmul.f32 %v540, %v525
    %v546 = vmul.f32 %v543, %v525
    %v547 = vadd.f32 %v544, 1e-05
    %v548 = vadd.f32 %v545, 1e-05
    %v549 = vadd.f32 %v546, 1e-05
    %v550 = vrsqrt.pop %v547
    %v551 = vrsqrt.pop %v548
    %v552 = vrsqrt.pop %v549
    %v553 = vmul.f32 %v529, %v550
    %v554 = vmul.f32 %v530, %v551
    %v555 = vmul.f32 %v531, %v552
    %v556 = vmul.f32 %v553, %v512
    %v557 = vmul.f32 %v554, %v512
    %v558 = vmul.f32 %v555, %v512
    %v559 = vadd.f32 %v556, %v513
    %v560 = vadd.f32 %v557, %v513
    %v561 = vadd.f32 %v558, %v513
    %v565 = vunpack.c.l.s4 1966171168
    %v566 = vunpack.c.0.s8 %v565
    %v567 = vlaneseq
    %v568 = vshrl.u32 %v567, 7
    %v569 = vsub.s32 %v566, %v568
    %v570 = vrot.slane %v559, %v569
    %v572 = vunpack.c.l.s4 1966171168
    %v573 = vunpack.c.0.s8 %v572
    %v574 = vlaneseq
    %v575 = vshrl.u32 %v574, 7
    %v576 = vsub.s32 %v573, %v575
    %v577 = vrot.slane %v570, %v576
    %v579 = vunpack.c.l.s4 1966171168
    %v580 = vunpack.c.0.s8 %v579
    %v581 = vlaneseq
    %v582 = vshrl.u32 %v581, 7
    %v583 = vsub.s32 %v580, %v582
    %v584 = vrot.slane %v560, %v583
    %v585 = vcombine.high %v584, %v584
    %v587 = vunpack.c.l.s4 1966171168
    %v588 = vunpack.c.0.s8 %v587
    %v589 = vlaneseq
    %v590 = vshrl.u32 %v589, 7
    %v591 = vsub.s32 %v588, %v590
    %v592 = vrot.slane %v585, %v591
    %v595 = vld [vmem:[%s1 + $0x100] sm:$0xf]
    %v596 = vld [vmem:[%s1 + $0x108] sm:$0xf]
    %v597 = vld [vmem:[%s1 + $0x110] sm:$0xf]
    %v598 = vld [vmem:[%s1 + $0x118] sm:$0xf]
    %v599 = vld [vmem:[%s1 + $0x120] sm:$0xf]
    %v600 = vld [vmem:[%s1 + $0x128] sm:$0xf]
    %v601 = vld [vmem:[%s1 + $0x130] sm:$0xf]
    %v602 = vld [vmem:[%s1 + $0x138] sm:$0xf]
    %v603 = vld [vmem:[%s1 + $0x140] sm:$0xf]
    %v604 = vld [vmem:[%s1 + $0x148] sm:$0xf]
    %v605 = vld [vmem:[%s1 + $0x150] sm:$0xf]
    %v606 = vld [vmem:[%s1 + $0x158] sm:$0xf]
    %v607 = vld [vmem:[%s1 + $0x160] sm:$0xf]
    %v608 = vld [vmem:[%s1 + $0x168] sm:$0xf]
    %v609 = vld [vmem:[%s1 + $0x170] sm:$0xf]
    %v610 = vld [vmem:[%s1 + $0x178] sm:$0xf]
    %v611 = vpack.c.bf16 %v560, %v559
    %v612 = vpack.c.bf16 %v561, %v561
    %v613 = vld [vmem:[%s2 + $0x25] ss:$0 sm:$0xff]
    %v618 = vunpack.c.l.b16 %v599
    %v619 = vunpack.c.l.b16 %v600
    %v620 = vunpack.c.l.b16 %v601
    %v621 = vunpack.c.l.b16 %v602
    %v622 = vpack.c.b16 %v619, %v618
    %v623 = vpack.c.b16 %v621, %v620
    %v627 = vsel %vm514, %v611, 0
    %v630 = vsel %vm514, %v612, 0
    %632 = vmatprep.subr.bf16.mxu0 0
    %633 = vmatpush1.bf16.msra.mxu0 %v622
    %634 = vmatprep.subr.bf16.mxu0 0
    %635 = vmatpush1.bf16.msra.mxu0 %v623
    %636 = vmatprep.subr.bf16.mxu0 0
    %637 = vmatpush1.bf16.msra.mxu0 0
    %638 = vmatprep.subr.bf16.mxu0 0
    %639 = vmatpush1.bf16.msra.mxu0 0
    %640 = vmatprep.subr.bf16.mxu0 0
    %641 = vmatpush1.bf16.msra.mxu0 0
    %642 = vmatprep.subr.bf16.mxu0 0
    %643 = vmatpush1.bf16.msra.mxu0 0
    %644 = vmatprep.subr.bf16.mxu0 0
    %645 = vmatpush1.bf16.msra.mxu0 0
    %646 = vmatprep.subr.bf16.mxu0 0
    %647 = vmatpush1.bf16.msra.mxu0 0
    %648 = vmatprep.subr.bf16.mxu0 0
    %649 = vmatpush1.bf16.msra.mxu0 0
    %650 = vmatprep.subr.bf16.mxu0 0
    %651 = vmatpush1.bf16.msra.mxu0 0
    %652 = vmatprep.subr.bf16.mxu0 0
    %653 = vmatpush1.bf16.msra.mxu0 0
    %654 = vmatprep.subr.bf16.mxu0 0
    %655 = vmatpush1.bf16.msra.mxu0 0
    %656 = vmatprep.subr.bf16.mxu0 0
    %657 = vmatpush1.bf16.msra.mxu0 0
    %658 = vmatprep.subr.bf16.mxu0 0
    %659 = vmatpush1.bf16.msra.mxu0 0
    %660 = vmatprep.subr.bf16.mxu0 0
    %661 = vmatpush1.bf16.msra.mxu0 0
    %662 = vmatprep.subr.bf16.mxu0 0
    %663 = vmatpush1.bf16.msra.mxu0 0
    %664 = vmatprep.mubr.bf16.mxu0 0
    %665 = vmatmul.mubr.bf16.gmra.mrb[0].mxu0 %v627
    %v666 = vpop.f32.mrb[0].mxu0
    %v667 = vadd.f32 %v613, %v666
    %v668 = vpop.f32.mrb[0].mxu0
    %v669 = vpop.f32.mrb[0].mxu0
    %v670 = vadd.f32 %v613, %v669
    %v671 = vpop.f32.mrb[0].mxu0
    %672 = vmatprep.mubr.bf16.mxu0 0
    %673 = vmatmul.mubr.bf16.gmra.mrb[0].mxu0 %v630
    %v674 = vpop.f32.mrb[0].mxu0
    %v675 = vadd.f32 %v613, %v674
    %v676 = vpop.f32.mrb[0].mxu0
    %v677 = vpop.f32.mrb[0].mxu0
    %v678 = vpop.f32.mrb[0].mxu0
    %679 = vdwg.mxu0
    %v680 = vld [vmem:[%s2 + $0x26] ss:$0 sm:$0xff]
    %v685 = vunpack.c.l.b16 %v603
    %v686 = vunpack.c.l.b16 %v604
    %v687 = vunpack.c.l.b16 %v605
    %v688 = vunpack.c.l.b16 %v606
    %v689 = vpack.c.b16 %v686, %v685
    %v690 = vpack.c.b16 %v688, %v687
    %693 = vmatprep.subr.bf16.mxu0 0
    %694 = vmatpush1.bf16.msra.mxu0 %v689
    %695 = vmatprep.subr.bf16.mxu0 0
    %696 = vmatpush1.bf16.msra.mxu0 %v690
    %697 = vmatprep.subr.bf16.mxu0 0
    %698 = vmatpush1.bf16.msra.mxu0 0
    %699 = vmatprep.subr.bf16.mxu0 0
    %700 = vmatpush1.bf16.msra.mxu0 0
    %701 = vmatprep.subr.bf16.mxu0 0
    %702 = vmatpush1.bf16.msra.mxu0 0
    %703 = vmatprep.subr.bf16.mxu0 0
    %704 = vmatpush1.bf16.msra.mxu0 0
    %705 = vmatprep.subr.bf16.mxu0 0
    %706 = vmatpush1.bf16.msra.mxu0 0
    %707 = vmatprep.subr.bf16.mxu0 0
    %708 = vmatpush1.bf16.msra.mxu0 0
    %709 = vmatprep.subr.bf16.mxu0 0
    %710 = vmatpush1.bf16.msra.mxu0 0
    %711 = vmatprep.subr.bf16.mxu0 0
    %712 = vmatpush1.bf16.msra.mxu0 0
    %713 = vmatprep.subr.bf16.mxu0 0
    %714 = vmatpush1.bf16.msra.mxu0 0
    %715 = vmatprep.subr.bf16.mxu0 0
    %716 = vmatpush1.bf16.msra.mxu0 0
    %717 = vmatprep.subr.bf16.mxu0 0
    %718 = vmatpush1.bf16.msra.mxu0 0
    %719 = vmatprep.subr.bf16.mxu0 0
    %720 = vmatpush1.bf16.msra.mxu0 0
    %721 = vmatprep.subr.bf16.mxu0 0
    %722 = vmatpush1.bf16.msra.mxu0 0
    %723 = vmatprep.subr.bf16.mxu0 0
    %724 = vmatpush1.bf16.msra.mxu0 0
    %725 = vmatprep.mubr.bf16.mxu0 0
    %726 = vmatmul.mubr.bf16.gmra.mrb[0].mxu0 %v627
    %v727 = vpop.f32.mrb[0].mxu0
    %v728 = vadd.f32 %v680, %v727
    %v729 = vpop.f32.mrb[0].mxu0
    %v730 = vpop.f32.mrb[0].mxu0
    %v731 = vadd.f32 %v680, %v730
    %v732 = vpop.f32.mrb[0].mxu0
    %733 = vmatprep.mubr.bf16.mxu0 0
    %734 = vmatmul.mubr.bf16.gmra.mrb[0].mxu0 %v630
    %v735 = vpop.f32.mrb[0].mxu0
    %v736 = vadd.f32 %v680, %v735
    %v737 = vpop.f32.mrb[0].mxu0
    %v738 = vpop.f32.mrb[0].mxu0
    %v739 = vpop.f32.mrb[0].mxu0
    %740 = vdwg.mxu0
    %v741 = vpack.c.bf16 %v577, %v577
    %v742 = vpack.c.bf16 %v592, %v592
    %v743 = vld [vmem:[%s2 + $0x24] ss:$0 sm:$0xff]
    %v746 = vunpack.c.l.b16 %v741
    %v747 = vunpack.c.l.b16 %v742
    %v748 = vrot.slane %v747, 7
    %vm749 = vcmask 1041409
    %v750 = vsel %vm749, %v748, %v746
    %v751 = vpack.c.b16 %v750, %v750
    %v756 = vunpack.c.l.b16 %v595
    %v757 = vunpack.c.l.b16 %v596
    %v758 = vunpack.c.l.b16 %v597
    %v759 = vunpack.c.l.b16 %v598
    %v760 = vpack.c.b16 %v757, %v756
    %v761 = vpack.c.b16 %v759, %v758
    %v765 = vsel %vm514, %v751, 0
    %767 = vmatprep.subr.bf16.mxu0 0
    %768 = vmatpush1.bf16.msra.mxu0 %v760
    %769 = vmatprep.subr.bf16.mxu0 0
    %770 = vmatpush1.bf16.msra.mxu0 %v761
    %771 = vmatprep.subr.bf16.mxu0 0
    %772 = vmatpush1.bf16.msra.mxu0 0
    %773 = vmatprep.subr.bf16.mxu0 0
    %774 = vmatpush1.bf16.msra.mxu0 0
    %775 = vmatprep.subr.bf16.mxu0 0
    %776 = vmatpush1.bf16.msra.mxu0 0
    %777 = vmatprep.subr.bf16.mxu0 0
    %778 = vmatpush1.bf16.msra.mxu0 0
    %779 = vmatprep.subr.bf16.mxu0 0
    %780 = vmatpush1.bf16.msra.mxu0 0
    %781 = vmatprep.subr.bf16.mxu0 0
    %782 = vmatpush1.bf16.msra.mxu0 0
    %783 = vmatprep.subr.bf16.mxu0 0
    %784 = vmatpush1.bf16.msra.mxu0 0
    %785 = vmatprep.subr.bf16.mxu0 0
    %786 = vmatpush1.bf16.msra.mxu0 0
    %787 = vmatprep.subr.bf16.mxu0 0
    %788 = vmatpush1.bf16.msra.mxu0 0
    %789 = vmatprep.subr.bf16.mxu0 0
    %790 = vmatpush1.bf16.msra.mxu0 0
    %791 = vmatprep.subr.bf16.mxu0 0
    %792 = vmatpush1.bf16.msra.mxu0 0
    %793 = vmatprep.subr.bf16.mxu0 0
    %794 = vmatpush1.bf16.msra.mxu0 0
    %795 = vmatprep.subr.bf16.mxu0 0
    %796 = vmatpush1.bf16.msra.mxu0 0
    %797 = vmatprep.subr.bf16.mxu0 0
    %798 = vmatpush1.bf16.msra.mxu0 0
    %799 = vmatprep.mubr.bf16.mxu0 0
    %800 = vmatmul.mubr.bf16.gmra.mrb[0].mxu0 %v765
    %v801 = vpop.f32.mrb[0].mxu0
    %v802 = vadd.f32 %v743, %v801
    %v803 = vpop.f32.mrb[0].mxu0
    %v804 = vpop.f32.mrb[0].mxu0
    %v805 = vpop.f32.mrb[0].mxu0
    %806 = vdwg.mxu0
    %v807 = vld [vmem:[%s2 + $0x40] sm:$0xf]
    %v808 = vld [vmem:[%s2 + $0x40] sm:$0xf0]
    %v811 = vunpack.c.l.s4 1966171168
    %v812 = vunpack.c.0.s8 %v811
    %v813 = vlaneseq
    %v814 = vshrl.u32 %v813, 7
    %v815 = vsub.s32 %v812, %v814
    %v816 = vrot.slane %v802, %v815
    %v817 = vcombine.high %v816, %v816
    %v819 = vunpack.c.l.s4 1966171168
    %v820 = vunpack.c.0.s8 %v819
    %v821 = vlaneseq
    %v822 = vshrl.u32 %v821, 7
    %v823 = vsub.s32 %v820, %v822
    %v824 = vrot.slane %v816, %v823
    %v826 = vunpack.c.l.s4 1966171168
    %v827 = vunpack.c.0.s8 %v826
    %v828 = vlaneseq
    %v829 = vshrl.u32 %v828, 7
    %v830 = vsub.s32 %v827, %v829
    %v831 = vrot.slane %v817, %v830
    %v832 = vlaneseq
    %v833 = vshrl.u32 %v832, 7
    %v834 = vsub.s32 0, %v833
    %v835 = vrot.slane %v824, %v834
    %v836 = vlaneseq
    %v837 = vshrl.u32 %v836, 7
    %v838 = vsub.s32 0, %v837
    %v839 = vrot.slane %v831, %v838
    %v842 = vmul.f32 %v835, %v807
    %v843 = vmul.f32 %v839, %v807
    %v847 = vcombine.high %v667, %v667
    %v849 = vunpack.c.l.s4 1966171168
    %v850 = vunpack.c.0.s8 %v849
    %v851 = vlaneseq
    %v852 = vshrl.u32 %v851, 7
    %v853 = vsub.s32 %v850, %v852
    %v854 = vrot.slane %v667, %v853
    %v856 = vunpack.c.l.s4 1966171168
    %v857 = vunpack.c.0.s8 %v856
    %v858 = vlaneseq
    %v859 = vshrl.u32 %v858, 7
    %v860 = vsub.s32 %v857, %v859
    %v861 = vrot.slane %v847, %v860
    %v862 = vcombine.high %v854, %v854
    %v863 = vcombine.high %v861, %v861
    %v865 = vunpack.c.l.s4 1966171168
    %v866 = vunpack.c.0.s8 %v865
    %v867 = vlaneseq
    %v868 = vshrl.u32 %v867, 7
    %v869 = vsub.s32 %v866, %v868
    %v870 = vrot.slane %v854, %v869
    %v872 = vunpack.c.l.s4 1966171168
    %v873 = vunpack.c.0.s8 %v872
    %v874 = vlaneseq
    %v875 = vshrl.u32 %v874, 7
    %v876 = vsub.s32 %v873, %v875
    %v877 = vrot.slane %v861, %v876
    %v879 = vunpack.c.l.s4 1966171168
    %v880 = vunpack.c.0.s8 %v879
    %v881 = vlaneseq
    %v882 = vshrl.u32 %v881, 7
    %v883 = vsub.s32 %v880, %v882
    %v884 = vrot.slane %v862, %v883
    %v886 = vunpack.c.l.s4 1966171168
    %v887 = vunpack.c.0.s8 %v886
    %v888 = vlaneseq
    %v889 = vshrl.u32 %v888, 7
    %v890 = vsub.s32 %v887, %v889
    %v891 = vrot.slane %v863, %v890
    %v892 = vcombine.high %v870, %v870
    %v893 = vcombine.high %v877, %v877
    %v894 = vcombine.high %v884, %v884
    %v895 = vcombine.high %v891, %v891
    %v896 = vcombine.high %v670, %v670
    %v898 = vunpack.c.l.s4 1966171168
    %v899 = vunpack.c.0.s8 %v898
    %v900 = vlaneseq
    %v901 = vshrl.u32 %v900, 7
    %v902 = vsub.s32 %v899, %v901
    %v903 = vrot.slane %v670, %v902
    %v905 = vunpack.c.l.s4 1966171168
    %v906 = vunpack.c.0.s8 %v905
    %v907 = vlaneseq
    %v908 = vshrl.u32 %v907, 7
    %v909 = vsub.s32 %v906, %v908
    %v910 = vrot.slane %v896, %v909
    %v911 = vcombine.high %v903, %v903
    %v912 = vcombine.high %v910, %v910
    %v914 = vunpack.c.l.s4 1966171168
    %v915 = vunpack.c.0.s8 %v914
    %v916 = vlaneseq
    %v917 = vshrl.u32 %v916, 7
    %v918 = vsub.s32 %v915, %v917
    %v919 = vrot.slane %v903, %v918
    %v921 = vunpack.c.l.s4 1966171168
    %v922 = vunpack.c.0.s8 %v921
    %v923 = vlaneseq
    %v924 = vshrl.u32 %v923, 7
    %v925 = vsub.s32 %v922, %v924
    %v926 = vrot.slane %v910, %v925
    %v928 = vunpack.c.l.s4 1966171168
    %v929 = vunpack.c.0.s8 %v928
    %v930 = vlaneseq
    %v931 = vshrl.u32 %v930, 7
    %v932 = vsub.s32 %v929, %v931
    %v933 = vrot.slane %v911, %v932
    %v935 = vunpack.c.l.s4 1966171168
    %v936 = vunpack.c.0.s8 %v935
    %v937 = vlaneseq
    %v938 = vshrl.u32 %v937, 7
    %v939 = vsub.s32 %v936, %v938
    %v940 = vrot.slane %v912, %v939
    %v941 = vcombine.high %v919, %v919
    %v942 = vcombine.high %v926, %v926
    %v943 = vcombine.high %v933, %v933
    %v944 = vcombine.high %v940, %v940
    %v946 = vunpack.c.l.s4 1966171168
    %v947 = vunpack.c.0.s8 %v946
    %v948 = vlaneseq
    %v949 = vshrl.u32 %v948, 7
    %v950 = vsub.s32 %v947, %v949
    %v951 = vrot.slane %v675, %v950
    %v952 = vcombine.high %v951, %v951
    %v954 = vunpack.c.l.s4 1966171168
    %v955 = vunpack.c.0.s8 %v954
    %v956 = vlaneseq
    %v957 = vshrl.u32 %v956, 7
    %v958 = vsub.s32 %v955, %v957
    %v959 = vrot.slane %v951, %v958
    %v961 = vunpack.c.l.s4 1966171168
    %v962 = vunpack.c.0.s8 %v961
    %v963 = vlaneseq
    %v964 = vshrl.u32 %v963, 7
    %v965 = vsub.s32 %v962, %v964
    %v966 = vrot.slane %v952, %v965
    %v970 = vcombine.high %v728, %v728
    %v972 = vunpack.c.l.s4 1966171168
    %v973 = vunpack.c.0.s8 %v972
    %v974 = vlaneseq
    %v975 = vshrl.u32 %v974, 7
    %v976 = vsub.s32 %v973, %v975
    %v977 = vrot.slane %v728, %v976
    %v979 = vunpack.c.l.s4 1966171168
    %v980 = vunpack.c.0.s8 %v979
    %v981 = vlaneseq
    %v982 = vshrl.u32 %v981, 7
    %v983 = vsub.s32 %v980, %v982
    %v984 = vrot.slane %v970, %v983
    %v985 = vcombine.high %v977, %v977
    %v986 = vcombine.high %v984, %v984
    %v988 = vunpack.c.l.s4 1966171168
    %v989 = vunpack.c.0.s8 %v988
    %v990 = vlaneseq
    %v991 = vshrl.u32 %v990, 7
    %v992 = vsub.s32 %v989, %v991
    %v993 = vrot.slane %v977, %v992
    %v995 = vunpack.c.l.s4 1966171168
    %v996 = vunpack.c.0.s8 %v995
    %v997 = vlaneseq
    %v998 = vshrl.u32 %v997, 7
    %v999 = vsub.s32 %v996, %v998
    %v1000 = vrot.slane %v984, %v999
    %v1002 = vunpack.c.l.s4 1966171168
    %v1003 = vunpack.c.0.s8 %v1002
    %v1004 = vlaneseq
    %v1005 = vshrl.u32 %v1004, 7
    %v1006 = vsub.s32 %v1003, %v1005
    %v1007 = vrot.slane %v985, %v1006
    %v1009 = vunpack.c.l.s4 1966171168
    %v1010 = vunpack.c.0.s8 %v1009
    %v1011 = vlaneseq
    %v1012 = vshrl.u32 %v1011, 7
    %v1013 = vsub.s32 %v1010, %v1012
    %v1014 = vrot.slane %v986, %v1013
    %v1015 = vcombine.high %v993, %v993
    %v1016 = vcombine.high %v1000, %v1000
    %v1017 = vcombine.high %v1007, %v1007
    %v1018 = vcombine.high %v1014, %v1014
    %v1019 = vcombine.high %v731, %v731
    %v1021 = vunpack.c.l.s4 1966171168
    %v1022 = vunpack.c.0.s8 %v1021
    %v1023 = vlaneseq
    %v1024 = vshrl.u32 %v1023, 7
    %v1025 = vsub.s32 %v1022, %v1024
    %v1026 = vrot.slane %v731, %v1025
    %v1028 = vunpack.c.l.s4 1966171168
    %v1029 = vunpack.c.0.s8 %v1028
    %v1030 = vlaneseq
    %v1031 = vshrl.u32 %v1030, 7
    %v1032 = vsub.s32 %v1029, %v1031
    %v1033 = vrot.slane %v1019, %v1032
    %v1034 = vcombine.high %v1026, %v1026
    %v1035 = vcombine.high %v1033, %v1033
    %v1037 = vunpack.c.l.s4 1966171168
    %v1038 = vunpack.c.0.s8 %v1037
    %v1039 = vlaneseq
    %v1040 = vshrl.u32 %v1039, 7
    %v1041 = vsub.s32 %v1038, %v1040
    %v1042 = vrot.slane %v1026, %v1041
    %v1044 = vunpack.c.l.s4 1966171168
    %v1045 = vunpack.c.0.s8 %v1044
    %v1046 = vlaneseq
    %v1047 = vshrl.u32 %v1046, 7
    %v1048 = vsub.s32 %v1045, %v1047
    %v1049 = vrot.slane %v1033, %v1048
    %v1051 = vunpack.c.l.s4 1966171168
    %v1052 = vunpack.c.0.s8 %v1051
    %v1053 = vlaneseq
    %v1054 = vshrl.u32 %v1053, 7
    %v1055 = vsub.s32 %v1052, %v1054
    %v1056 = vrot.slane %v1034, %v1055
    %v1058 = vunpack.c.l.s4 1966171168
    %v1059 = vunpack.c.0.s8 %v1058
    %v1060 = vlaneseq
    %v1061 = vshrl.u32 %v1060, 7
    %v1062 = vsub.s32 %v1059, %v1061
    %v1063 = vrot.slane %v1035, %v1062
    %v1064 = vcombine.high %v1042, %v1042
    %v1065 = vcombine.high %v1049, %v1049
    %v1066 = vcombine.high %v1056, %v1056
    %v1067 = vcombine.high %v1063, %v1063
    %v1069 = vunpack.c.l.s4 1966171168
    %v1070 = vunpack.c.0.s8 %v1069
    %v1071 = vlaneseq
    %v1072 = vshrl.u32 %v1071, 7
    %v1073 = vsub.s32 %v1070, %v1072
    %v1074 = vrot.slane %v736, %v1073
    %v1075 = vcombine.high %v1074, %v1074
    %v1077 = vunpack.c.l.s4 1966171168
    %v1078 = vunpack.c.0.s8 %v1077
    %v1079 = vlaneseq
    %v1080 = vshrl.u32 %v1079, 7
    %v1081 = vsub.s32 %v1078, %v1080
    %v1082 = vrot.slane %v1074, %v1081
    %v1084 = vunpack.c.l.s4 1966171168
    %v1085 = vunpack.c.0.s8 %v1084
    %v1086 = vlaneseq
    %v1087 = vshrl.u32 %v1086, 7
    %v1088 = vsub.s32 %v1085, %v1087
    %v1089 = vrot.slane %v1075, %v1088
    %v1090 = vpack.c.bf16 %v842, %v842
    %v1091 = vpack.c.bf16 %v843, %v843
    %v1092 = vcombine.low %v870, %v884
    %v1093 = vcombine.low %v892, %v894
    %v1094 = vcombine.low %v877, %v891
    %v1095 = vcombine.low %v893, %v895
    %v1097 = vunpack.c.l.s4 1966171168
    %v1098 = vunpack.c.0.s8 %v1097
    %v1099 = vlaneseq
    %v1100 = vshrl.u32 %v1099, 7
    %v1101 = vsub.s32 %v1098, %v1100
    %v1102 = vrot.slane %v1092, %v1101
    %v1104 = vunpack.c.l.s4 1966171168
    %v1105 = vunpack.c.0.s8 %v1104
    %v1106 = vlaneseq
    %v1107 = vshrl.u32 %v1106, 7
    %v1108 = vsub.s32 %v1105, %v1107
    %v1109 = vrot.slane %v1093, %v1108
    %v1111 = vunpack.c.l.s4 1966171168
    %v1112 = vunpack.c.0.s8 %v1111
    %v1113 = vlaneseq
    %v1114 = vshrl.u32 %v1113, 7
    %v1115 = vsub.s32 %v1112, %v1114
    %v1116 = vrot.slane %v1094, %v1115
    %v1118 = vunpack.c.l.s4 1966171168
    %v1119 = vunpack.c.0.s8 %v1118
    %v1120 = vlaneseq
    %v1121 = vshrl.u32 %v1120, 7
    %v1122 = vsub.s32 %v1119, %v1121
    %v1123 = vrot.slane %v1095, %v1122
    %v1124 = vcombine.low %v1102, %v1109
    %v1125 = vcombine.low %v1116, %v1123
    %v1127 = vunpack.c.l.s4 1966171168
    %v1128 = vunpack.c.0.s8 %v1127
    %v1129 = vlaneseq
    %v1130 = vshrl.u32 %v1129, 7
    %v1131 = vsub.s32 %v1128, %v1130
    %v1132 = vrot.slane %v1124, %v1131
    %v1134 = vunpack.c.l.s4 1966171168
    %v1135 = vunpack.c.0.s8 %v1134
    %v1136 = vlaneseq
    %v1137 = vshrl.u32 %v1136, 7
    %v1138 = vsub.s32 %v1135, %v1137
    %v1139 = vrot.slane %v1125, %v1138
    %v1140 = vcombine.low %v1132, %v1139
    %v1142 = vunpack.c.l.s4 1966171168
    %v1143 = vunpack.c.0.s8 %v1142
    %v1144 = vlaneseq
    %v1145 = vshrl.u32 %v1144, 7
    %v1146 = vsub.s32 %v1143, %v1145
    %v1147 = vrot.slane %v919, %v1146
    %v1149 = vunpack.c.l.s4 1966171168
    %v1150 = vunpack.c.0.s8 %v1149
    %v1151 = vlaneseq
    %v1152 = vshrl.u32 %v1151, 7
    %v1153 = vsub.s32 %v1150, %v1152
    %v1154 = vrot.slane %v1147, %v1153
    %v1155 = vcombine.low %v933, %v941
    %v1156 = vcombine.low %v943, %v926
    %v1157 = vcombine.low %v940, %v942
    %v1158 = vcombine.low %v944, %v959
    %v1160 = vunpack.c.l.s4 1966171168
    %v1161 = vunpack.c.0.s8 %v1160
    %v1162 = vlaneseq
    %v1163 = vshrl.u32 %v1162, 7
    %v1164 = vsub.s32 %v1161, %v1163
    %v1165 = vrot.slane %v1155, %v1164
    %v1167 = vunpack.c.l.s4 1966171168
    %v1168 = vunpack.c.0.s8 %v1167
    %v1169 = vlaneseq
    %v1170 = vshrl.u32 %v1169, 7
    %v1171 = vsub.s32 %v1168, %v1170
    %v1172 = vrot.slane %v1156, %v1171
    %v1174 = vunpack.c.l.s4 1966171168
    %v1175 = vunpack.c.0.s8 %v1174
    %v1176 = vlaneseq
    %v1177 = vshrl.u32 %v1176, 7
    %v1178 = vsub.s32 %v1175, %v1177
    %v1179 = vrot.slane %v1157, %v1178
    %v1181 = vunpack.c.l.s4 1966171168
    %v1182 = vunpack.c.0.s8 %v1181
    %v1183 = vlaneseq
    %v1184 = vshrl.u32 %v1183, 7
    %v1185 = vsub.s32 %v1182, %v1184
    %v1186 = vrot.slane %v1158, %v1185
    %v1187 = vcombine.low %v1165, %v1172
    %v1188 = vcombine.low %v1179, %v1186
    %v1190 = vunpack.c.l.s4 1966171168
    %v1191 = vunpack.c.0.s8 %v1190
    %v1192 = vlaneseq
    %v1193 = vshrl.u32 %v1192, 7
    %v1194 = vsub.s32 %v1191, %v1193
    %v1195 = vrot.slane %v1187, %v1194
    %v1197 = vunpack.c.l.s4 1966171168
    %v1198 = vunpack.c.0.s8 %v1197
    %v1199 = vlaneseq
    %v1200 = vshrl.u32 %v1199, 7
    %v1201 = vsub.s32 %v1198, %v1200
    %v1202 = vrot.slane %v1188, %v1201
    %v1203 = vcombine.low %v1195, %v1202
    %v1205 = vunpack.c.l.s4 1966171168
    %v1206 = vunpack.c.0.s8 %v1205
    %v1207 = vlaneseq
    %v1208 = vshrl.u32 %v1207, 7
    %v1209 = vsub.s32 %v1206, %v1208
    %v1210 = vrot.slane %v966, %v1209
    %v1212 = vunpack.c.l.s4 1966171168
    %v1213 = vunpack.c.0.s8 %v1212
    %v1214 = vlaneseq
    %v1215 = vshrl.u32 %v1214, 7
    %v1216 = vsub.s32 %v1213, %v1215
    %v1217 = vrot.slane %v1210, %v1216
    %v1222 = vpack.c.bf16 %v1154, %v1140
    %v1223 = vpack.c.bf16 %v1217, %v1203
    %v1225 = vsel %vm514, %v1090, 0
    %v1228 = vsel %vm514, %v1222, 0
    %1230 = vmatprep.subr.bf16.mxu0 0
    %1231 = vmatpush1.bf16.xpose.msra.mxu0 %v1228
    %1232 = vmatprep.subr.bf16.mxu0 0
    %1233 = vmatpush1.bf16.xpose.msra.mxu0 0
    %1234 = vmatprep.subr.bf16.mxu0 0
    %1235 = vmatpush1.bf16.xpose.msra.mxu0 0
    %1236 = vmatprep.subr.bf16.mxu0 0
    %1237 = vmatpush1.bf16.xpose.msra.mxu0 0
    %1238 = vmatprep.subr.bf16.mxu0 0
    %1239 = vmatpush1.bf16.xpose.msra.mxu0 0
    %1240 = vmatprep.subr.bf16.mxu0 0
    %1241 = vmatpush1.bf16.xpose.msra.mxu0 0
    %1242 = vmatprep.subr.bf16.mxu0 0
    %1243 = vmatpush1.bf16.xpose.msra.mxu0 0
    %1244 = vmatprep.subr.bf16.mxu0 0
    %1245 = vmatpush1.bf16.xpose.msra.mxu0 0
    %1246 = vmatprep.subr.bf16.mxu0 0
    %1247 = vmatpush1.bf16.xpose.msra.mxu0 0
    %1248 = vmatprep.subr.bf16.mxu0 0
    %1249 = vmatpush1.bf16.xpose.msra.mxu0 0
    %1250 = vmatprep.subr.bf16.mxu0 0
    %1251 = vmatpush1.bf16.xpose.msra.mxu0 0
    %1252 = vmatprep.subr.bf16.mxu0 0
    %1253 = vmatpush1.bf16.xpose.msra.mxu0 0
    %1254 = vmatprep.subr.bf16.mxu0 0
    %1255 = vmatpush1.bf16.xpose.msra.mxu0 0
    %1256 = vmatprep.subr.bf16.mxu0 0
    %1257 = vmatpush1.bf16.xpose.msra.mxu0 0
    %1258 = vmatprep.subr.bf16.mxu0 0
    %1259 = vmatpush1.bf16.xpose.msra.mxu0 0
    %1260 = vmatprep.subr.bf16.mxu0 0
    %1261 = vmatpush1.bf16.xpose.msra.mxu0 0
    %1262 = vmatprep.mubr.bf16.mxu0 0
    %1263 = vmatmul.mubr.bf16.gmra.mrb[0].mxu0 %v1225
    %v1264 = vpop.f32.mrb[0].mxu0
    %v1265 = vadd.f32 0.0, %v1264
    %v1266 = vpop.f32.mrb[0].mxu0
    %v1267 = vpop.f32.mrb[0].mxu0
    %v1268 = vpop.f32.mrb[0].mxu0
    %1269 = vdwg.mxu0
    %v1271 = vsel %vm514, %v1091, 0
    %v1274 = vsel %vm514, %v1223, 0
    %1276 = vmatprep.subr.bf16.mxu0 0
    %1277 = vmatpush1.bf16.xpose.msra.mxu0 %v1274
    %1278 = vmatprep.subr.bf16.mxu0 0
    %1279 = vmatpush1.bf16.xpose.msra.mxu0 0
    %1280 = vmatprep.subr.bf16.mxu0 0
    %1281 = vmatpush1.bf16.xpose.msra.mxu0 0
    %1282 = vmatprep.subr.bf16.mxu0 0
    %1283 = vmatpush1.bf16.xpose.msra.mxu0 0
    %1284 = vmatprep.subr.bf16.mxu0 0
    %1285 = vmatpush1.bf16.xpose.msra.mxu0 0
    %1286 = vmatprep.subr.bf16.mxu0 0
    %1287 = vmatpush1.bf16.xpose.msra.mxu0 0
    %1288 = vmatprep.subr.bf16.mxu0 0
    %1289 = vmatpush1.bf16.xpose.msra.mxu0 0
    %1290 = vmatprep.subr.bf16.mxu0 0
    %1291 = vmatpush1.bf16.xpose.msra.mxu0 0
    %1292 = vmatprep.subr.bf16.mxu0 0
    %1293 = vmatpush1.bf16.xpose.msra.mxu0 0
    %1294 = vmatprep.subr.bf16.mxu0 0
    %1295 = vmatpush1.bf16.xpose.msra.mxu0 0
    %1296 = vmatprep.subr.bf16.mxu0 0
    %1297 = vmatpush1.bf16.xpose.msra.mxu0 0
    %1298 = vmatprep.subr.bf16.mxu0 0
    %1299 = vmatpush1.bf16.xpose.msra.mxu0 0
    %1300 = vmatprep.subr.bf16.mxu0 0
    %1301 = vmatpush1.bf16.xpose.msra.mxu0 0
    %1302 = vmatprep.subr.bf16.mxu0 0
    %1303 = vmatpush1.bf16.xpose.msra.mxu0 0
    %1304 = vmatprep.subr.bf16.mxu0 0
    %1305 = vmatpush1.bf16.xpose.msra.mxu0 0
    %1306 = vmatprep.subr.bf16.mxu0 0
    %1307 = vmatpush1.bf16.xpose.msra.mxu0 0
    %1308 = vmatprep.mubr.bf16.mxu0 0
    %1309 = vmatmul.mubr.bf16.gmra.mrb[0].mxu0 %v1271
    %v1310 = vpop.f32.mrb[0].mxu0
    %v1311 = vadd.f32 0.0, %v1310
    %v1312 = vpop.f32.mrb[0].mxu0
    %v1313 = vpop.f32.mrb[0].mxu0
    %v1314 = vpop.f32.mrb[0].mxu0
    %1315 = vdwg.mxu0
    %vm1316 = vcmask 68608
    %v1317 = vsel %vm1316, %v1265, -inf
    %1318 = vmax.xlane.f32.xlu0 %v1317
    %v1319 = vpop.xlane.xlu0 %1318
    %v1320 = vsel %vm1316, %v1311, -inf
    %1321 = vmax.xlane.f32.xlu0 %v1320
    %v1322 = vpop.xlane.xlu0 %1321
    %v1323 = vsub.f32 %v1265, %v1319
    %v1324 = vsub.f32 %v1311, %v1322
    %v1325 = vmul.f32 %v1323, 1.442695
    %v1326 = vpow.pop %v1325
    %v1327 = vmul.f32 %v1324, 1.442695
    %v1328 = vpow.pop %v1327
    %v1329 = vsel %vm1316, %v1326, 0.0
    %1330 = vadd.xlane.f32.xlu0 %v1329
    %v1331 = vpop.xlane.xlu0 %1330
    %v1332 = vsel %vm1316, %v1328, 0.0
    %1333 = vadd.xlane.f32.xlu0 %v1332
    %v1334 = vpop.xlane.xlu0 %1333
    %v1335 = vrcp.pop %v1331
    %v1336 = vrcp.pop %v1334
    %v1337 = vmul.f32 %v1326, %v1335
    %v1338 = vmul.f32 %v1328, %v1336
    %v1339 = vpack.c.bf16 %v1337, %v1337
    %v1340 = vpack.c.bf16 %v1338, %v1338
    %v1341 = vcombine.low %v993, %v1007
    %v1342 = vcombine.low %v1015, %v1017
    %v1343 = vcombine.low %v1000, %v1014
    %v1344 = vcombine.low %v1016, %v1018
    %v1346 = vunpack.c.l.s4 1966171168
    %v1347 = vunpack.c.0.s8 %v1346
    %v1348 = vlaneseq
    %v1349 = vshrl.u32 %v1348, 7
    %v1350 = vsub.s32 %v1347, %v1349
    %v1351 = vrot.slane %v1341, %v1350
    %v1353 = vunpack.c.l.s4 1966171168
    %v1354 = vunpack.c.0.s8 %v1353
    %v1355 = vlaneseq
    %v1356 = vshrl.u32 %v1355, 7
    %v1357 = vsub.s32 %v1354, %v1356
    %v1358 = vrot.slane %v1342, %v1357
    %v1360 = vunpack.c.l.s4 1966171168
    %v1361 = vunpack.c.0.s8 %v1360
    %v1362 = vlaneseq
    %v1363 = vshrl.u32 %v1362, 7
    %v1364 = vsub.s32 %v1361, %v1363
    %v1365 = vrot.slane %v1343, %v1364
    %v1367 = vunpack.c.l.s4 1966171168
    %v1368 = vunpack.c.0.s8 %v1367
    %v1369 = vlaneseq
    %v1370 = vshrl.u32 %v1369, 7
    %v1371 = vsub.s32 %v1368, %v1370
    %v1372 = vrot.slane %v1344, %v1371
    %v1373 = vcombine.low %v1351, %v1358
    %v1374 = vcombine.low %v1365, %v1372
    %v1376 = vunpack.c.l.s4 1966171168
    %v1377 = vunpack.c.0.s8 %v1376
    %v1378 = vlaneseq
    %v1379 = vshrl.u32 %v1378, 7
    %v1380 = vsub.s32 %v1377, %v1379
    %v1381 = vrot.slane %v1373, %v1380
    %v1383 = vunpack.c.l.s4 1966171168
    %v1384 = vunpack.c.0.s8 %v1383
    %v1385 = vlaneseq
    %v1386 = vshrl.u32 %v1385, 7
    %v1387 = vsub.s32 %v1384, %v1386
    %v1388 = vrot.slane %v1374, %v1387
    %v1389 = vcombine.low %v1381, %v1388
    %v1391 = vunpack.c.l.s4 1966171168
    %v1392 = vunpack.c.0.s8 %v1391
    %v1393 = vlaneseq
    %v1394 = vshrl.u32 %v1393, 7
    %v1395 = vsub.s32 %v1392, %v1394
    %v1396 = vrot.slane %v1042, %v1395
    %v1398 = vunpack.c.l.s4 1966171168
    %v1399 = vunpack.c.0.s8 %v1398
    %v1400 = vlaneseq
    %v1401 = vshrl.u32 %v1400, 7
    %v1402 = vsub.s32 %v1399, %v1401
    %v1403 = vrot.slane %v1396, %v1402
    %v1404 = vcombine.low %v1056, %v1064
    %v1405 = vcombine.low %v1066, %v1049
    %v1406 = vcombine.low %v1063, %v1065
    %v1407 = vcombine.low %v1067, %v1082
    %v1409 = vunpack.c.l.s4 1966171168
    %v1410 = vunpack.c.0.s8 %v1409
    %v1411 = vlaneseq
    %v1412 = vshrl.u32 %v1411, 7
    %v1413 = vsub.s32 %v1410, %v1412
    %v1414 = vrot.slane %v1404, %v1413
    %v1416 = vunpack.c.l.s4 1966171168
    %v1417 = vunpack.c.0.s8 %v1416
    %v1418 = vlaneseq
    %v1419 = vshrl.u32 %v1418, 7
    %v1420 = vsub.s32 %v1417, %v1419
    %v1421 = vrot.slane %v1405, %v1420
    %v1423 = vunpack.c.l.s4 1966171168
    %v1424 = vunpack.c.0.s8 %v1423
    %v1425 = vlaneseq
    %v1426 = vshrl.u32 %v1425, 7
    %v1427 = vsub.s32 %v1424, %v1426
    %v1428 = vrot.slane %v1406, %v1427
    %v1430 = vunpack.c.l.s4 1966171168
    %v1431 = vunpack.c.0.s8 %v1430
    %v1432 = vlaneseq
    %v1433 = vshrl.u32 %v1432, 7
    %v1434 = vsub.s32 %v1431, %v1433
    %v1435 = vrot.slane %v1407, %v1434
    %v1436 = vcombine.low %v1414, %v1421
    %v1437 = vcombine.low %v1428, %v1435
    %v1439 = vunpack.c.l.s4 1966171168
    %v1440 = vunpack.c.0.s8 %v1439
    %v1441 = vlaneseq
    %v1442 = vshrl.u32 %v1441, 7
    %v1443 = vsub.s32 %v1440, %v1442
    %v1444 = vrot.slane %v1436, %v1443
    %v1446 = vunpack.c.l.s4 1966171168
    %v1447 = vunpack.c.0.s8 %v1446
    %v1448 = vlaneseq
    %v1449 = vshrl.u32 %v1448, 7
    %v1450 = vsub.s32 %v1447, %v1449
    %v1451 = vrot.slane %v1437, %v1450
    %v1452 = vcombine.low %v1444, %v1451
    %v1454 = vunpack.c.l.s4 1966171168
    %v1455 = vunpack.c.0.s8 %v1454
    %v1456 = vlaneseq
    %v1457 = vshrl.u32 %v1456, 7
    %v1458 = vsub.s32 %v1455, %v1457
    %v1459 = vrot.slane %v1089, %v1458
    %v1461 = vunpack.c.l.s4 1966171168
    %v1462 = vunpack.c.0.s8 %v1461
    %v1463 = vlaneseq
    %v1464 = vshrl.u32 %v1463, 7
    %v1465 = vsub.s32 %v1462, %v1464
    %v1466 = vrot.slane %v1459, %v1465
    %v1471 = vpack.c.bf16 %v1403, %v1389
    %v1472 = vpack.c.bf16 %v1466, %v1452
    %vm1473 = vcmask 72704
    %v1475 = vsel %vm1473, %v1339, 0
    %vm1477 = vcmask 1044480
    %v1478 = vsel %vm302, 4294967295, 65535
    %v1479 = vsel %vm1477, %v1478, 0
    %v1481 = vand.u32 %v1471, %v1479
    %1483 = vmatprep.subr.bf16.mxu0 0
    %1484 = vmatpush1.bf16.msra.mxu0 %v1481
    %1485 = vmatprep.subr.bf16.mxu0 0
    %1486 = vmatpush1.bf16.msra.mxu0 0
    %1487 = vmatprep.subr.bf16.mxu0 0
    %1488 = vmatpush1.bf16.msra.mxu0 0
    %1489 = vmatprep.subr.bf16.mxu0 0
    %1490 = vmatpush1.bf16.msra.mxu0 0
    %1491 = vmatprep.subr.bf16.mxu0 0
    %1492 = vmatpush1.bf16.msra.mxu0 0
    %1493 = vmatprep.subr.bf16.mxu0 0
    %1494 = vmatpush1.bf16.msra.mxu0 0
    %1495 = vmatprep.subr.bf16.mxu0 0
    %1496 = vmatpush1.bf16.msra.mxu0 0
    %1497 = vmatprep.subr.bf16.mxu0 0
    %1498 = vmatpush1.bf16.msra.mxu0 0
    %1499 = vmatprep.subr.bf16.mxu0 0
    %1500 = vmatpush1.bf16.msra.mxu0 0
    %1501 = vmatprep.subr.bf16.mxu0 0
    %1502 = vmatpush1.bf16.msra.mxu0 0
    %1503 = vmatprep.subr.bf16.mxu0 0
    %1504 = vmatpush1.bf16.msra.mxu0 0
    %1505 = vmatprep.subr.bf16.mxu0 0
    %1506 = vmatpush1.bf16.msra.mxu0 0
    %1507 = vmatprep.subr.bf16.mxu0 0
    %1508 = vmatpush1.bf16.msra.mxu0 0
    %1509 = vmatprep.subr.bf16.mxu0 0
    %1510 = vmatpush1.bf16.msra.mxu0 0
    %1511 = vmatprep.subr.bf16.mxu0 0
    %1512 = vmatpush1.bf16.msra.mxu0 0
    %1513 = vmatprep.subr.bf16.mxu0 0
    %1514 = vmatpush1.bf16.msra.mxu0 0
    %1515 = vmatprep.mubr.bf16.mxu0 0
    %1516 = vmatmul.mubr.bf16.gmra.mrb[0].mxu0 %v1475
    %v1517 = vpop.f32.mrb[0].mxu0
    %v1518 = vadd.f32 0.0, %v1517
    %v1519 = vpop.f32.mrb[0].mxu0
    %v1520 = vpop.f32.mrb[0].mxu0
    %v1521 = vpop.f32.mrb[0].mxu0
    %1522 = vdwg.mxu0
    %v1524 = vsel %vm1473, %v1340, 0
    %v1527 = vand.u32 %v1472, %v1479
    %1529 = vmatprep.subr.bf16.mxu0 0
    %1530 = vmatpush1.bf16.msra.mxu0 %v1527
    %1531 = vmatprep.subr.bf16.mxu0 0
    %1532 = vmatpush1.bf16.msra.mxu0 0
    %1533 = vmatprep.subr.bf16.mxu0 0
    %1534 = vmatpush1.bf16.msra.mxu0 0
    %1535 = vmatprep.subr.bf16.mxu0 0
    %1536 = vmatpush1.bf16.msra.mxu0 0
    %1537 = vmatprep.subr.bf16.mxu0 0
    %1538 = vmatpush1.bf16.msra.mxu0 0
    %1539 = vmatprep.subr.bf16.mxu0 0
    %1540 = vmatpush1.bf16.msra.mxu0 0
    %1541 = vmatprep.subr.bf16.mxu0 0
    %1542 = vmatpush1.bf16.msra.mxu0 0
    %1543 = vmatprep.subr.bf16.mxu0 0
    %1544 = vmatpush1.bf16.msra.mxu0 0
    %1545 = vmatprep.subr.bf16.mxu0 0
    %1546 = vmatpush1.bf16.msra.mxu0 0
    %1547 = vmatprep.subr.bf16.mxu0 0
    %1548 = vmatpush1.bf16.msra.mxu0 0
    %1549 = vmatprep.subr.bf16.mxu0 0
    %1550 = vmatpush1.bf16.msra.mxu0 0
    %1551 = vmatprep.subr.bf16.mxu0 0
    %1552 = vmatpush1.bf16.msra.mxu0 0
    %1553 = vmatprep.subr.bf16.mxu0 0
    %1554 = vmatpush1.bf16.msra.mxu0 0
    %1555 = vmatprep.subr.bf16.mxu0 0
    %1556 = vmatpush1.bf16.msra.mxu0 0
    %1557 = vmatprep.subr.bf16.mxu0 0
    %1558 = vmatpush1.bf16.msra.mxu0 0
    %1559 = vmatprep.subr.bf16.mxu0 0
    %1560 = vmatpush1.bf16.msra.mxu0 0
    %1561 = vmatprep.mubr.bf16.mxu0 0
    %1562 = vmatmul.mubr.bf16.gmra.mrb[0].mxu0 %v1524
    %v1563 = vpop.f32.mrb[0].mxu0
    %v1564 = vadd.f32 0.0, %v1563
    %v1565 = vpop.f32.mrb[0].mxu0
    %v1566 = vpop.f32.mrb[0].mxu0
    %v1567 = vpop.f32.mrb[0].mxu0
    %1568 = vdwg.mxu0
    %v1570 = vrot.slane %v808, 4
    %v1572 = vmul.f32 %v1518, %v1570
    %v1573 = vmul.f32 %v1564, %v1570
    %vm1574 = vcmask 257024
    %v1575 = vsel %vm1574, %v1572, 0.0
    %v1576 = vrot.slane %v1575, 4
    %v1577 = vadd.f32 %v1575, %v1576
    %v1578 = vrot.slane %v1577, 2
    %v1579 = vadd.f32 %v1577, %v1578
    %v1580 = vrot.slane %v1579, 1
    %v1581 = vadd.f32 %v1579, %v1580
    %v1582 = vsel %vm1574, %v1573, 0.0
    %v1583 = vrot.slane %v1582, 4
    %v1584 = vadd.f32 %v1582, %v1583
    %v1585 = vrot.slane %v1584, 2
    %v1586 = vadd.f32 %v1584, %v1585
    %v1587 = vrot.slane %v1586, 1
    %v1588 = vadd.f32 %v1586, %v1587
    %v1589 = vpack.c.bf16 %v1581, %v1581
    %v1590 = vpack.c.bf16 %v1588, %v1588
    %v1591 = vld [vmem:[%s2 + $0x27] ss:$0 sm:$0xff]
    %v1594 = vunpack.c.l.b16 %v1589
    %v1595 = vunpack.c.l.b16 %v1590
    %v1596 = vsel %vm749, %v1595, %v1594
    %v1597 = vpack.c.b16 %v1596, %v1596
    %v1602 = vunpack.c.l.b16 %v607
    %v1603 = vunpack.c.l.b16 %v608
    %v1604 = vunpack.c.l.b16 %v609
    %v1605 = vunpack.c.l.b16 %v610
    %v1606 = vpack.c.b16 %v1603, %v1602
    %v1607 = vpack.c.b16 %v1605, %v1604
    %v1611 = vsel %vm514, %v1597, 0
    %1613 = vmatprep.subr.bf16.mxu0 0
    %1614 = vmatpush1.bf16.msra.mxu0 %v1606
    %1615 = vmatprep.subr.bf16.mxu0 0
    %1616 = vmatpush1.bf16.msra.mxu0 %v1607
    %1617 = vmatprep.subr.bf16.mxu0 0
    %1618 = vmatpush1.bf16.msra.mxu0 0
    %1619 = vmatprep.subr.bf16.mxu0 0
    %1620 = vmatpush1.bf16.msra.mxu0 0
    %1621 = vmatprep.subr.bf16.mxu0 0
    %1622 = vmatpush1.bf16.msra.mxu0 0
    %1623 = vmatprep.subr.bf16.mxu0 0
    %1624 = vmatpush1.bf16.msra.mxu0 0
    %1625 = vmatprep.subr.bf16.mxu0 0
    %1626 = vmatpush1.bf16.msra.mxu0 0
    %1627 = vmatprep.subr.bf16.mxu0 0
    %1628 = vmatpush1.bf16.msra.mxu0 0
    %1629 = vmatprep.subr.bf16.mxu0 0
    %1630 = vmatpush1.bf16.msra.mxu0 0
    %1631 = vmatprep.subr.bf16.mxu0 0
    %1632 = vmatpush1.bf16.msra.mxu0 0
    %1633 = vmatprep.subr.bf16.mxu0 0
    %1634 = vmatpush1.bf16.msra.mxu0 0
    %1635 = vmatprep.subr.bf16.mxu0 0
    %1636 = vmatpush1.bf16.msra.mxu0 0
    %1637 = vmatprep.subr.bf16.mxu0 0
    %1638 = vmatpush1.bf16.msra.mxu0 0
    %1639 = vmatprep.subr.bf16.mxu0 0
    %1640 = vmatpush1.bf16.msra.mxu0 0
    %1641 = vmatprep.subr.bf16.mxu0 0
    %1642 = vmatpush1.bf16.msra.mxu0 0
    %1643 = vmatprep.subr.bf16.mxu0 0
    %1644 = vmatpush1.bf16.msra.mxu0 0
    %1645 = vmatprep.mubr.bf16.mxu0 0
    %1646 = vmatmul.mubr.bf16.gmra.mrb[0].mxu0 %v1611
    %v1647 = vpop.f32.mrb[0].mxu0
    %v1648 = vadd.f32 %v1591, %v1647
    %v1649 = vpop.f32.mrb[0].mxu0
    %v1650 = vpop.f32.mrb[0].mxu0
    %v1651 = vpop.f32.mrb[0].mxu0
    %1652 = vdwg.mxu0
    %v1655 = vunpack.c.l.s4 1966171168
    %v1656 = vunpack.c.0.s8 %v1655
    %v1657 = vlaneseq
    %v1658 = vshrl.u32 %v1657, 7
    %v1659 = vsub.s32 %v1656, %v1658
    %v1660 = vrot.slane %v1648, %v1659
    %v1661 = vcombine.high %v1660, %v1660
    %v1663 = vunpack.c.l.s4 1966171168
    %v1664 = vunpack.c.0.s8 %v1663
    %v1665 = vlaneseq
    %v1666 = vshrl.u32 %v1665, 7
    %v1667 = vsub.s32 %v1664, %v1666
    %v1668 = vrot.slane %v1660, %v1667
    %v1670 = vunpack.c.l.s4 1966171168
    %v1671 = vunpack.c.0.s8 %v1670
    %v1672 = vlaneseq
    %v1673 = vshrl.u32 %v1672, 7
    %v1674 = vsub.s32 %v1671, %v1673
    %v1675 = vrot.slane %v1661, %v1674
    %v1678 = vadd.f32 %v577, %v1668
    %v1679 = vadd.f32 %v592, %v1675
    %v1680 = vld [vmem:[%s2 + $0x30] ss:$0 sm:$0xff]
    %v1681 = vld [vmem:[%s2 + $0x31] ss:$0 sm:$0xff]
    %v1684 = vcombine.low %v1678, %v1679
    %v1686 = vunpack.c.l.s4 1966171168
    %v1687 = vunpack.c.0.s8 %v1686
    %v1688 = vlaneseq
    %v1689 = vshrl.u32 %v1688, 7
    %v1690 = vsub.s32 %v1687, %v1689
    %v1691 = vrot.slane %v1684, %v1690
    %v1693 = vunpack.c.l.s4 1966171168
    %v1694 = vunpack.c.0.s8 %v1693
    %v1695 = vlaneseq
    %v1696 = vshrl.u32 %v1695, 7
    %v1697 = vsub.s32 %v1694, %v1696
    %v1698 = vrot.slane %v1691, %v1697
    %v1700 = vsel %vm521, %v1698, 0.0
    %1701 = vadd.xlane.f32.xlu0 %v1700
    %v1702 = vpop.xlane.xlu0 %1701
    %v1703 = vmul.f32 %v1702, %v525
    %v1705 = vlaneseq
    %v1706 = vshrl.u32 %v1705, 7
    %v1707 = vsub.s32 0, %v1706
    %v1708 = vrot.slane %v1703, %v1707
    %v1709 = vlaneseq
    %v1710 = vshrl.u32 %v1709, 7
    %v1711 = vsub.s32 1, %v1710
    %v1712 = vrot.slane %v1703, %v1711
    %v1715 = vsub.f32 %v1678, %v1708
    %v1716 = vsub.f32 %v1679, %v1712
    %v1717 = vmul.f32 %v1715, %v1715
    %v1718 = vmul.f32 %v1716, %v1716
    %v1721 = vcombine.low %v1717, %v1718
    %v1723 = vunpack.c.l.s4 1966171168
    %v1724 = vunpack.c.0.s8 %v1723
    %v1725 = vlaneseq
    %v1726 = vshrl.u32 %v1725, 7
    %v1727 = vsub.s32 %v1724, %v1726
    %v1728 = vrot.slane %v1721, %v1727
    %v1730 = vunpack.c.l.s4 1966171168
    %v1731 = vunpack.c.0.s8 %v1730
    %v1732 = vlaneseq
    %v1733 = vshrl.u32 %v1732, 7
    %v1734 = vsub.s32 %v1731, %v1733
    %v1735 = vrot.slane %v1728, %v1734
    %v1737 = vsel %vm521, %v1735, 0.0
    %1738 = vadd.xlane.f32.xlu0 %v1737
    %v1739 = vpop.xlane.xlu0 %1738
    %v1740 = vmul.f32 %v1739, %v525
    %v1741 = vadd.f32 %v1740, 1e-05
    %v1742 = vrsqrt.pop %v1741
    %v1744 = vlaneseq
    %v1745 = vshrl.u32 %v1744, 7
    %v1746 = vsub.s32 0, %v1745
    %v1747 = vrot.slane %v1742, %v1746
    %v1748 = vlaneseq
    %v1749 = vshrl.u32 %v1748, 7
    %v1750 = vsub.s32 1, %v1749
    %v1751 = vrot.slane %v1742, %v1750
    %v1754 = vmul.f32 %v1715, %v1747
    %v1755 = vmul.f32 %v1716, %v1751
    %v1758 = vunpack.c.l.s4 1966171168
    %v1759 = vunpack.c.0.s8 %v1758
    %v1760 = vlaneseq
    %v1761 = vshrl.u32 %v1760, 7
    %v1762 = vsub.s32 %v1759, %v1761
    %v1763 = vrot.slane %v1680, %v1762
    %v1764 = vcombine.high %v1763, %v1763
    %v1766 = vunpack.c.l.s4 1966171168
    %v1767 = vunpack.c.0.s8 %v1766
    %v1768 = vlaneseq
    %v1769 = vshrl.u32 %v1768, 7
    %v1770 = vsub.s32 %v1767, %v1769
    %v1771 = vrot.slane %v1763, %v1770
    %v1773 = vunpack.c.l.s4 1966171168
    %v1774 = vunpack.c.0.s8 %v1773
    %v1775 = vlaneseq
    %v1776 = vshrl.u32 %v1775, 7
    %v1777 = vsub.s32 %v1774, %v1776
    %v1778 = vrot.slane %v1764, %v1777
    %v1781 = vmul.f32 %v1754, %v1771
    %v1782 = vmul.f32 %v1755, %v1778
    %v1785 = vunpack.c.l.s4 1966171168
    %v1786 = vunpack.c.0.s8 %v1785
    %v1787 = vlaneseq
    %v1788 = vshrl.u32 %v1787, 7
    %v1789 = vsub.s32 %v1786, %v1788
    %v1790 = vrot.slane %v1681, %v1789
    %v1791 = vcombine.high %v1790, %v1790
    %v1793 = vunpack.c.l.s4 1966171168
    %v1794 = vunpack.c.0.s8 %v1793
    %v1795 = vlaneseq
    %v1796 = vshrl.u32 %v1795, 7
    %v1797 = vsub.s32 %v1794, %v1796
    %v1798 = vrot.slane %v1790, %v1797
    %v1800 = vunpack.c.l.s4 1966171168
    %v1801 = vunpack.c.0.s8 %v1800
    %v1802 = vlaneseq
    %v1803 = vshrl.u32 %v1802, 7
    %v1804 = vsub.s32 %v1801, %v1803
    %v1805 = vrot.slane %v1791, %v1804
    %v1808 = vadd.f32 %v1781, %v1798
    %v1809 = vadd.f32 %v1782, %v1805
    %v1810 = vld [vmem:[%s1 + $0x180] sm:$0xf]
    %v1811 = vld [vmem:[%s1 + $0x188] sm:$0xf]
    %v1812 = vld [vmem:[%s1 + $0x190] sm:$0xf]
    %v1813 = vld [vmem:[%s1 + $0x198] sm:$0xf]
    %v1814 = vld [vmem:[%s1 + $0x1a0] sm:$0xf]
    %v1815 = vld [vmem:[%s1 + $0x1a8] sm:$0xf]
    %v1816 = vld [vmem:[%s1 + $0x1b0] sm:$0xf]
    %v1817 = vld [vmem:[%s1 + $0x1b8] sm:$0xf]
    %v1818 = vld [vmem:[%s1 + $0x1c0] sm:$0xf]
    %v1819 = vld [vmem:[%s1 + $0x1c8] sm:$0xf]
    %v1820 = vld [vmem:[%s1 + $0x1d0] sm:$0xf]
    %v1821 = vld [vmem:[%s1 + $0x1d8] sm:$0xf]
    %v1822 = vpack.c.bf16 %v1808, %v1808
    %v1823 = vpack.c.bf16 %v1809, %v1809
    %v1824 = vld [vmem:[%s2 + $0x32] ss:$0 sm:$0xff]
    %v1827 = vunpack.c.l.b16 %v1822
    %v1828 = vunpack.c.l.b16 %v1823
    %v1829 = vrot.slane %v1828, 7
    %v1830 = vsel %vm749, %v1829, %v1827
    %v1831 = vpack.c.b16 %v1830, %v1830
    %v1836 = vunpack.c.l.b16 %v1810
    %v1837 = vunpack.c.l.b16 %v1811
    %v1838 = vunpack.c.l.b16 %v1812
    %v1839 = vunpack.c.l.b16 %v1813
    %v1840 = vpack.c.b16 %v1837, %v1836
    %v1841 = vpack.c.b16 %v1839, %v1838
    %v1845 = vsel %vm514, %v1831, 0
    %1847 = vmatprep.subr.bf16.mxu0 0
    %1848 = vmatpush1.bf16.msra.mxu0 %v1840
    %1849 = vmatprep.subr.bf16.mxu0 0
    %1850 = vmatpush1.bf16.msra.mxu0 %v1841
    %1851 = vmatprep.subr.bf16.mxu0 0
    %1852 = vmatpush1.bf16.msra.mxu0 0
    %1853 = vmatprep.subr.bf16.mxu0 0
    %1854 = vmatpush1.bf16.msra.mxu0 0
    %1855 = vmatprep.subr.bf16.mxu0 0
    %1856 = vmatpush1.bf16.msra.mxu0 0
    %1857 = vmatprep.subr.bf16.mxu0 0
    %1858 = vmatpush1.bf16.msra.mxu0 0
    %1859 = vmatprep.subr.bf16.mxu0 0
    %1860 = vmatpush1.bf16.msra.mxu0 0
    %1861 = vmatprep.subr.bf16.mxu0 0
    %1862 = vmatpush1.bf16.msra.mxu0 0
    %1863 = vmatprep.subr.bf16.mxu0 0
    %1864 = vmatpush1.bf16.msra.mxu0 0
    %1865 = vmatprep.subr.bf16.mxu0 0
    %1866 = vmatpush1.bf16.msra.mxu0 0
    %1867 = vmatprep.subr.bf16.mxu0 0
    %1868 = vmatpush1.bf16.msra.mxu0 0
    %1869 = vmatprep.subr.bf16.mxu0 0
    %1870 = vmatpush1.bf16.msra.mxu0 0
    %1871 = vmatprep.subr.bf16.mxu0 0
    %1872 = vmatpush1.bf16.msra.mxu0 0
    %1873 = vmatprep.subr.bf16.mxu0 0
    %1874 = vmatpush1.bf16.msra.mxu0 0
    %1875 = vmatprep.subr.bf16.mxu0 0
    %1876 = vmatpush1.bf16.msra.mxu0 0
    %1877 = vmatprep.subr.bf16.mxu0 0
    %1878 = vmatpush1.bf16.msra.mxu0 0
    %1879 = vmatprep.mubr.bf16.mxu0 0
    %1880 = vmatmul.mubr.bf16.gmra.mrb[0].mxu0 %v1845
    %v1881 = vpop.f32.mrb[0].mxu0
    %v1882 = vadd.f32 %v1824, %v1881
    %v1883 = vpop.f32.mrb[0].mxu0
    %v1884 = vpop.f32.mrb[0].mxu0
    %v1885 = vpop.f32.mrb[0].mxu0
    %1886 = vdwg.mxu0
    %v1887 = vmax.f32 %v1882, 0.0
    %v1888 = vpack.c.bf16 %v1887, %v1887
    %v1889 = vld [vmem:[%s2 + $0x33] ss:$0 sm:$0xff]
    %v1898 = vunpack.c.l.b16 %v1814
    %v1899 = vunpack.c.l.b16 %v1815
    %v1900 = vunpack.c.l.b16 %v1816
    %v1901 = vunpack.c.l.b16 %v1817
    %v1902 = vunpack.c.l.b16 %v1818
    %v1903 = vunpack.c.l.b16 %v1819
    %v1904 = vunpack.c.l.b16 %v1820
    %v1905 = vunpack.c.l.b16 %v1821
    %v1906 = vpack.c.b16 %v1899, %v1898
    %v1907 = vpack.c.b16 %v1901, %v1900
    %v1908 = vpack.c.b16 %v1903, %v1902
    %v1909 = vpack.c.b16 %v1905, %v1904
    %vm1914 = vcmask 523264
    %v1916 = vsel %vm1914, %v1888, 0
    %1918 = vmatprep.subr.bf16.mxu0 0
    %1919 = vmatpush1.bf16.msra.mxu0 %v1906
    %1920 = vmatprep.subr.bf16.mxu0 0
    %1921 = vmatpush1.bf16.msra.mxu0 %v1907
    %1922 = vmatprep.subr.bf16.mxu0 0
    %1923 = vmatpush1.bf16.msra.mxu0 %v1908
    %1924 = vmatprep.subr.bf16.mxu0 0
    %1925 = vmatpush1.bf16.msra.mxu0 %v1909
    %1926 = vmatprep.subr.bf16.mxu0 0
    %1927 = vmatpush1.bf16.msra.mxu0 0
    %1928 = vmatprep.subr.bf16.mxu0 0
    %1929 = vmatpush1.bf16.msra.mxu0 0
    %1930 = vmatprep.subr.bf16.mxu0 0
    %1931 = vmatpush1.bf16.msra.mxu0 0
    %1932 = vmatprep.subr.bf16.mxu0 0
    %1933 = vmatpush1.bf16.msra.mxu0 0
    %1934 = vmatprep.subr.bf16.mxu0 0
    %1935 = vmatpush1.bf16.msra.mxu0 0
    %1936 = vmatprep.subr.bf16.mxu0 0
    %1937 = vmatpush1.bf16.msra.mxu0 0
    %1938 = vmatprep.subr.bf16.mxu0 0
    %1939 = vmatpush1.bf16.msra.mxu0 0
    %1940 = vmatprep.subr.bf16.mxu0 0
    %1941 = vmatpush1.bf16.msra.mxu0 0
    %1942 = vmatprep.subr.bf16.mxu0 0
    %1943 = vmatpush1.bf16.msra.mxu0 0
    %1944 = vmatprep.subr.bf16.mxu0 0
    %1945 = vmatpush1.bf16.msra.mxu0 0
    %1946 = vmatprep.subr.bf16.mxu0 0
    %1947 = vmatpush1.bf16.msra.mxu0 0
    %1948 = vmatprep.subr.bf16.mxu0 0
    %1949 = vmatpush1.bf16.msra.mxu0 0
    %1950 = vmatprep.mubr.bf16.mxu0 0
    %1951 = vmatmul.mubr.bf16.gmra.mrb[0].mxu0 %v1916
    %v1952 = vpop.f32.mrb[0].mxu0
    %v1953 = vadd.f32 %v1889, %v1952
    %v1954 = vpop.f32.mrb[0].mxu0
    %v1955 = vpop.f32.mrb[0].mxu0
    %v1956 = vpop.f32.mrb[0].mxu0
    %1957 = vdwg.mxu0
    %v1960 = vunpack.c.l.s4 1966171168
    %v1961 = vunpack.c.0.s8 %v1960
    %v1962 = vlaneseq
    %v1963 = vshrl.u32 %v1962, 7
    %v1964 = vsub.s32 %v1961, %v1963
    %v1965 = vrot.slane %v1953, %v1964
    %v1966 = vcombine.high %v1965, %v1965
    %v1968 = vunpack.c.l.s4 1966171168
    %v1969 = vunpack.c.0.s8 %v1968
    %v1970 = vlaneseq
    %v1971 = vshrl.u32 %v1970, 7
    %v1972 = vsub.s32 %v1969, %v1971
    %v1973 = vrot.slane %v1965, %v1972
    %v1975 = vunpack.c.l.s4 1966171168
    %v1976 = vunpack.c.0.s8 %v1975
    %v1977 = vlaneseq
    %v1978 = vshrl.u32 %v1977, 7
    %v1979 = vsub.s32 %v1976, %v1978
    %v1980 = vrot.slane %v1966, %v1979
    %v1983 = vadd.f32 %v1808, %v1973
    %v1984 = vadd.f32 %v1809, %v1980
    %v1985 = vld [vmem:[%s2 + $0x34] ss:$0 sm:$0xff]
    %v1986 = vld [vmem:[%s2 + $0x35] ss:$0 sm:$0xff]
    %v1989 = vcombine.low %v1983, %v1984
    %v1991 = vunpack.c.l.s4 1966171168
    %v1992 = vunpack.c.0.s8 %v1991
    %v1993 = vlaneseq
    %v1994 = vshrl.u32 %v1993, 7
    %v1995 = vsub.s32 %v1992, %v1994
    %v1996 = vrot.slane %v1989, %v1995
    %v1998 = vunpack.c.l.s4 1966171168
    %v1999 = vunpack.c.0.s8 %v1998
    %v2000 = vlaneseq
    %v2001 = vshrl.u32 %v2000, 7
    %v2002 = vsub.s32 %v1999, %v2001
    %v2003 = vrot.slane %v1996, %v2002
    %v2005 = vsel %vm521, %v2003, 0.0
    %2006 = vadd.xlane.f32.xlu0 %v2005
    %v2007 = vpop.xlane.xlu0 %2006
    %v2008 = vmul.f32 %v2007, %v525
    %v2010 = vlaneseq
    %v2011 = vshrl.u32 %v2010, 7
    %v2012 = vsub.s32 0, %v2011
    %v2013 = vrot.slane %v2008, %v2012
    %v2014 = vlaneseq
    %v2015 = vshrl.u32 %v2014, 7
    %v2016 = vsub.s32 1, %v2015
    %v2017 = vrot.slane %v2008, %v2016
    %v2020 = vsub.f32 %v1983, %v2013
    %v2021 = vsub.f32 %v1984, %v2017
    %v2022 = vmul.f32 %v2020, %v2020
    %v2023 = vmul.f32 %v2021, %v2021
    %v2026 = vcombine.low %v2022, %v2023
    %v2028 = vunpack.c.l.s4 1966171168
    %v2029 = vunpack.c.0.s8 %v2028
    %v2030 = vlaneseq
    %v2031 = vshrl.u32 %v2030, 7
    %v2032 = vsub.s32 %v2029, %v2031
    %v2033 = vrot.slane %v2026, %v2032
    %v2035 = vunpack.c.l.s4 1966171168
    %v2036 = vunpack.c.0.s8 %v2035
    %v2037 = vlaneseq
    %v2038 = vshrl.u32 %v2037, 7
    %v2039 = vsub.s32 %v2036, %v2038
    %v2040 = vrot.slane %v2033, %v2039
    %v2042 = vsel %vm521, %v2040, 0.0
    %2043 = vadd.xlane.f32.xlu0 %v2042
    %v2044 = vpop.xlane.xlu0 %2043
    %v2045 = vmul.f32 %v2044, %v525
    %v2046 = vadd.f32 %v2045, 1e-05
    %v2047 = vrsqrt.pop %v2046
    %v2049 = vlaneseq
    %v2050 = vshrl.u32 %v2049, 7
    %v2051 = vsub.s32 0, %v2050
    %v2052 = vrot.slane %v2047, %v2051
    %v2053 = vlaneseq
    %v2054 = vshrl.u32 %v2053, 7
    %v2055 = vsub.s32 1, %v2054
    %v2056 = vrot.slane %v2047, %v2055
    %v2059 = vmul.f32 %v2020, %v2052
    %v2060 = vmul.f32 %v2021, %v2056
    %v2063 = vunpack.c.l.s4 1966171168
    %v2064 = vunpack.c.0.s8 %v2063
    %v2065 = vlaneseq
    %v2066 = vshrl.u32 %v2065, 7
    %v2067 = vsub.s32 %v2064, %v2066
    %v2068 = vrot.slane %v1985, %v2067
    %v2069 = vcombine.high %v2068, %v2068
    %v2071 = vunpack.c.l.s4 1966171168
    %v2072 = vunpack.c.0.s8 %v2071
    %v2073 = vlaneseq
    %v2074 = vshrl.u32 %v2073, 7
    %v2075 = vsub.s32 %v2072, %v2074
    %v2076 = vrot.slane %v2068, %v2075
    %v2078 = vunpack.c.l.s4 1966171168
    %v2079 = vunpack.c.0.s8 %v2078
    %v2080 = vlaneseq
    %v2081 = vshrl.u32 %v2080, 7
    %v2082 = vsub.s32 %v2079, %v2081
    %v2083 = vrot.slane %v2069, %v2082
    %v2086 = vmul.f32 %v2059, %v2076
    %v2087 = vmul.f32 %v2060, %v2083
    %v2090 = vunpack.c.l.s4 1966171168
    %v2091 = vunpack.c.0.s8 %v2090
    %v2092 = vlaneseq
    %v2093 = vshrl.u32 %v2092, 7
    %v2094 = vsub.s32 %v2091, %v2093
    %v2095 = vrot.slane %v1986, %v2094
    %v2096 = vcombine.high %v2095, %v2095
    %v2098 = vunpack.c.l.s4 1966171168
    %v2099 = vunpack.c.0.s8 %v2098
    %v2100 = vlaneseq
    %v2101 = vshrl.u32 %v2100, 7
    %v2102 = vsub.s32 %v2099, %v2101
    %v2103 = vrot.slane %v2095, %v2102
    %v2105 = vunpack.c.l.s4 1966171168
    %v2106 = vunpack.c.0.s8 %v2105
    %v2107 = vlaneseq
    %v2108 = vshrl.u32 %v2107, 7
    %v2109 = vsub.s32 %v2106, %v2108
    %v2110 = vrot.slane %v2096, %v2109
    %v2113 = vadd.f32 %v2086, %v2103
    %v2114 = vadd.f32 %v2087, %v2110
    %v2115 = vld [vmem:[%s1 + $0x1e0] sm:$0xf]
    %v2116 = vld [vmem:[%s1 + $0x1e8] sm:$0xf]
    %v2117 = vld [vmem:[%s1 + $0x1f0] sm:$0xf]
    %v2118 = vld [vmem:[%s1 + $0x1f8] sm:$0xf]
    %v2119 = vpack.c.bf16 %v2113, %v2113
    %v2120 = vpack.c.bf16 %v2114, %v2114
    %v2121 = vld [vmem:[%s2 + $0x36] ss:$0 sm:$0xff]
    %v2124 = vunpack.c.l.b16 %v2119
    %v2125 = vunpack.c.l.b16 %v2120
    %v2126 = vrot.slane %v2125, 7
    %v2127 = vsel %vm749, %v2126, %v2124
    %v2128 = vpack.c.b16 %v2127, %v2127
    %v2133 = vunpack.c.l.b16 %v2115
    %v2134 = vunpack.c.l.b16 %v2116
    %v2135 = vunpack.c.l.b16 %v2117
    %v2136 = vunpack.c.l.b16 %v2118
    %v2137 = vpack.c.b16 %v2134, %v2133
    %v2138 = vpack.c.b16 %v2136, %v2135
    %v2142 = vsel %vm514, %v2128, 0
    %2144 = vmatprep.subr.bf16.mxu0 0
    %2145 = vmatpush1.bf16.msra.mxu0 %v2137
    %2146 = vmatprep.subr.bf16.mxu0 0
    %2147 = vmatpush1.bf16.msra.mxu0 %v2138
    %2148 = vmatprep.subr.bf16.mxu0 0
    %2149 = vmatpush1.bf16.msra.mxu0 0
    %2150 = vmatprep.subr.bf16.mxu0 0
    %2151 = vmatpush1.bf16.msra.mxu0 0
    %2152 = vmatprep.subr.bf16.mxu0 0
    %2153 = vmatpush1.bf16.msra.mxu0 0
    %2154 = vmatprep.subr.bf16.mxu0 0
    %2155 = vmatpush1.bf16.msra.mxu0 0
    %2156 = vmatprep.subr.bf16.mxu0 0
    %2157 = vmatpush1.bf16.msra.mxu0 0
    %2158 = vmatprep.subr.bf16.mxu0 0
    %2159 = vmatpush1.bf16.msra.mxu0 0
    %2160 = vmatprep.subr.bf16.mxu0 0
    %2161 = vmatpush1.bf16.msra.mxu0 0
    %2162 = vmatprep.subr.bf16.mxu0 0
    %2163 = vmatpush1.bf16.msra.mxu0 0
    %2164 = vmatprep.subr.bf16.mxu0 0
    %2165 = vmatpush1.bf16.msra.mxu0 0
    %2166 = vmatprep.subr.bf16.mxu0 0
    %2167 = vmatpush1.bf16.msra.mxu0 0
    %2168 = vmatprep.subr.bf16.mxu0 0
    %2169 = vmatpush1.bf16.msra.mxu0 0
    %2170 = vmatprep.subr.bf16.mxu0 0
    %2171 = vmatpush1.bf16.msra.mxu0 0
    %2172 = vmatprep.subr.bf16.mxu0 0
    %2173 = vmatpush1.bf16.msra.mxu0 0
    %2174 = vmatprep.subr.bf16.mxu0 0
    %2175 = vmatpush1.bf16.msra.mxu0 0
    %2176 = vmatprep.mubr.bf16.mxu0 0
    %2177 = vmatmul.mubr.bf16.gmra.mrb[0].mxu0 %v2142
    %v2178 = vpop.f32.mrb[0].mxu0
    %v2179 = vadd.f32 %v2121, %v2178
    %v2180 = vpop.f32.mrb[0].mxu0
    %v2181 = vpop.f32.mrb[0].mxu0
    %v2182 = vpop.f32.mrb[0].mxu0
    %2183 = vdwg.mxu0
    %v2186 = vunpack.c.l.s4 1966171168
    %v2187 = vunpack.c.0.s8 %v2186
    %v2188 = vlaneseq
    %v2189 = vshrl.u32 %v2188, 7
    %v2190 = vsub.s32 %v2187, %v2189
    %v2191 = vrot.slane %v2179, %v2190
    %v2192 = vcombine.high %v2191, %v2191
    %v2194 = vunpack.c.l.s4 1966171168
    %v2195 = vunpack.c.0.s8 %v2194
    %v2196 = vlaneseq
    %v2197 = vshrl.u32 %v2196, 7
    %v2198 = vsub.s32 %v2195, %v2197
    %v2199 = vrot.slane %v2191, %v2198
    %v2201 = vunpack.c.l.s4 1966171168
    %v2202 = vunpack.c.0.s8 %v2201
    %v2203 = vlaneseq
    %v2204 = vshrl.u32 %v2203, 7
    %v2205 = vsub.s32 %v2202, %v2204
    %v2206 = vrot.slane %v2192, %v2205
    %2209 = vst [vmem:[#allocation2] sm:$0x1] %v2199
    %2210 = vst [vmem:[#allocation2 + $0x1] sm:$0x1] %v2206
    // Predicated region
    $region14: #{tpu_custom_call.1} parent=1 // pred_check
      _
    $region15: #{tpu_custom_call.1} parent=1 // pred_check_branch
      %2212 = sbr.rel (0) target = $region17
    $region16: #{tpu_custom_call.1} parent=1 // pred_region
      %s2214 = ssub.s32 32, 32
      %2215 = vsyncadd [#allocation3], %s2214
      %s2216 = sshll.u32 [#allocation2], 4
      %s2217 = int_to_ptr.vmem [resolvable:$true] %s2216
      %2222 = dma.vmem_to_hbm [thread:$0]  %s2217, 32, %s3, [#allocation3], 16, 16, 1
    $region17: #{tpu_custom_call.1} parent=1 // pred_fallthru
      _
    // Predicated region
    $region18: #{tpu_custom_call.1} parent=1 // pred_check
      _
    $region19: #{tpu_custom_call.1} parent=1 // pred_check_branch
      %2224 = sbr.rel (0) target = $region21
    $region20: #{tpu_custom_call.1} parent=1 // pred_region
      %2225 = dma.done [#allocation3], 32
    $region21: #{tpu_custom_call.1} parent=1 // pred_fallthru
      _
    %2226 = vsyncpa [#allocation3], 1

</llo_original>
